<compile_context>
chip_gen: v6e
topology: v6e:2x2x1
jax: 0.10.0
libtpu: 0.0.40
codegen_flags: <defaults>
</compile_context>

<pallas_src>
import functools

import jax
import jax.numpy as jnp
import numpy as np
from jax import lax
from jax.experimental import pallas as pl
from jax.experimental.pallas import tpu as pltpu

LEAK = 0.2
BN_EPS = 1e-5
MXU_DTYPE = jnp.bfloat16       # MXU-native inputs; accumulation/epilogue in f32
MAX_SINGLE_BLOCK_ROWS = 1024   # guard for the single-block GEMM path


# ----------------------------------------------------------------------------
# In-kernel helpers
# ----------------------------------------------------------------------------
def _lane_fold(v, pack, oc):
    """Fold the `pack` replicated channel groups along the lane axis.

    v: (1, pack*oc).  Returns (1, pack*oc) where every lane holds the total of
    its channel (lane % oc), replicated across the pack copies, so it applies
    directly to the packed (rows, pack*oc) layout.  Rolls hit the XLU slot."""
    if pack == 1:
        return v
    out = v
    for p in range(1, pack):
        out = out + pltpu.roll(v, shift=p * oc, axis=1)
    return out


def _bn_lrelu_on_acc(acc, g, be, *, pack, oc, inv_count):
    """Training-mode BatchNorm (batch stats over N,H,W) + LeakyReLU applied to a
    fully resident pre-activation tile.  Two-pass mean/var in f32 registers
    (addresses the E[x^2]-E[x]^2 cancellation concern)."""
    mean = _lane_fold(jnp.sum(acc, axis=0, keepdims=True), pack, oc) * inv_count
    centered = acc - mean
    var = _lane_fold(jnp.sum(centered * centered, axis=0, keepdims=True),
                     pack, oc) * inv_count
    scale = g * lax.rsqrt(var + BN_EPS)          # rsqrt -> EUP slot
    y = centered * scale + be
    return jnp.where(y >= 0.0, y, LEAK * y)


# ----------------------------------------------------------------------------
# Pallas kernels (each runs as a single fully resident block)
# ----------------------------------------------------------------------------
def _gemm_bias_lrelu_kernel(x_ref, w_ref, b_ref, o_ref):
    """Layer 1: packed-im2col @ packed-W + b, LeakyReLU, lane-dense store."""
    acc = jnp.dot(x_ref[...], w_ref[...], preferred_element_type=jnp.float32)
    acc = acc + b_ref[...]
    o_ref[...] = jnp.where(acc >= 0.0, acc, LEAK * acc).astype(o_ref.dtype)


def _gemm_bn_lrelu_kernel(x_ref, w_ref, b_ref, g_ref, be_ref, o_ref,
                          *, pack, oc, inv_count):
    """Layer 2: conv GEMM + fused in-kernel BatchNorm batch stats + LeakyReLU."""
    acc = jnp.dot(x_ref[...], w_ref[...], preferred_element_type=jnp.float32)
    acc = acc + b_ref[...]
    act = _bn_lrelu_on_acc(acc, g_ref[...], be_ref[...],
                           pack=pack, oc=oc, inv_count=inv_count)
    o_ref[...] = act.astype(o_ref.dtype)


def _gemm_bn_lrelu_head_kernel(x_ref, w_ref, b_ref, g_ref, be_ref,
                               w4_ref, b4_ref, sel_ref, o_ref,
                               *, pack, oc, inv_count):
    """Layer 3 conv + BN + LReLU fused with the layer-4 head (4x4 valid conv to
    one channel == per-sample dot over the resident activation) + sigmoid.
    The layer-3 output never round-trips HBM."""
    acc = jnp.dot(x_ref[...], w_ref[...], preferred_element_type=jnp.float32)
    acc = acc + b_ref[...]
    act = _bn_lrelu_on_acc(acc, g_ref[...], be_ref[...],
                           pack=pack, oc=oc, inv_count=inv_count)
    # Layer 4: elementwise weight, select-matrix matmul groups rows per sample,
    # lane reduce finishes the contraction.
    tmp = act * w4_ref[...]                                           # (rows, L)
    per_sample = jnp.dot(sel_ref[...], tmp,
                         preferred_element_type=jnp.float32)          # (N, L)
    row_tot = jnp.sum(per_sample, axis=1, keepdims=True)              # (N, 1)
    logits = jnp.broadcast_to(row_tot, per_sample.shape) + b4_ref[...]
    sig = pl.reciprocal(1.0 + jnp.exp(-logits), approx=True)          # EUP divide
    o_ref[...] = sig.astype(o_ref.dtype)


# ----------------------------------------------------------------------------
# pallas_call plumbing
# ----------------------------------------------------------------------------
def _mosaic_params():
    return pltpu.CompilerParams(dimension_semantics=("arbitrary",),
                                vmem_limit_bytes=32 * 1024 * 1024)


def _full_spec(shape):
    zero = (0,) * len(shape)
    return pl.BlockSpec(shape, lambda i, _z=zero: _z)


def _call_single_block(kernel, operands, out_shape):
    """One-step grid: every operand/output is a single fully resident block.
    At these sizes per-grid-step overhead dominates, so row tiling is skipped
    on purpose (review item 1)."""
    return pl.pallas_call(
        kernel,
        out_shape=out_shape,
        grid=(1,),
        in_specs=[_full_spec(a.shape) for a in operands],
        out_specs=_full_spec(out_shape.shape),
        compiler_params=_mosaic_params(),
    )(*operands)


# ----------------------------------------------------------------------------
# Conv -> packed lane-dense GEMM operands
# ----------------------------------------------------------------------------
def _pack_factor(ow, oc):
    """Largest divisor of OW with pack*OC <= 128 (capped replication)."""
    p = max(1, min(ow, 128 // max(oc, 1)))
    while ow % p:
        p -= 1
    return p


def _replicate_block_diag(wmat, pack):
    """(K, OC) -> block-diagonal (pack*K, pack*OC) with `pack` copies of wmat."""
    if pack == 1:
        return wmat
    k, oc = wmat.shape
    eye = jnp.eye(pack, dtype=wmat.dtype)
    return jnp.einsum("ab,kc->akbc", eye, wmat).reshape(pack * k, pack * oc)


def _conv_gemm_operands(x_nhwc, w_oihw, b, stride, pad):
    """Packed lane-dense GEMM operands for a kxk/stride/pad conv.

    im2col is ONE XLA op (conv_general_dilated_patches on bf16 -> exact value
    copies), feature order (c, kh, kw); the matching permutation lives on the
    tiny weight, never on the activations.
    # TODO(synk): at real DCGAN scale pull patch extraction into the kernel
    # (memory_space=pl.ANY + strided DMAs) to avoid KH*KW HBM amplification.
    """
    n = x_nhwc.shape[0]
    oc, ic, kh, kw = w_oihw.shape
    patches = lax.conv_general_dilated_patches(
        x_nhwc.astype(MXU_DTYPE), (kh, kw), (stride, stride),
        [(pad, pad), (pad, pad)], dimension_numbers=("NHWC", "HWIO", "NHWC"))
    oh, ow = patches.shape[1], patches.shape[2]
    k = ic * kh * kw
    pack = _pack_factor(ow, oc)
    rows = n * oh * (ow // pack)
    # Single-block GEMM path (whole tile resident -> fused BN batch stats).
    # TODO(synk): add row/K grid axes with an f32 VMEM accumulator and per-tile
    # stat partials ('parallel' row axis for v7x megacore) for production sizes.
    assert rows <= MAX_SINGLE_BLOCK_ROWS, "enable a tiled path for large inputs"
    x_gemm = patches.reshape(rows, pack * k)                   # free reshape
    wmat = w_oihw.reshape(oc, k).T.astype(MXU_DTYPE)           # (K, OC), (c,kh,kw) order
    w_gemm = _replicate_block_diag(wmat, pack)                 # (pack*K, pack*OC)
    b_gemm = jnp.tile(b.astype(jnp.float32), pack).reshape(1, pack * oc)
    meta = dict(n=n, oh=oh, ow=ow, oc=oc, pack=pack, rows=rows)
    return x_gemm, w_gemm, b_gemm, meta


def _tile_per_channel(v, pack):
    return jnp.tile(v.astype(jnp.float32), pack).reshape(1, -1)


# ----------------------------------------------------------------------------
# Full forward pass (3 pallas_calls)
# ----------------------------------------------------------------------------
def discriminator_forward(params, dem_nchw, cp_nchw):
    dem = jnp.transpose(dem_nchw, (0, 2, 3, 1)).astype(jnp.float32)   # NCHW->NHWC
    cp = jnp.transpose(cp_nchw, (0, 2, 3, 1)).astype(jnp.float32)

    # ---- Layer 1: both branch convs + channel concat fused into ONE GEMM ----
    x1 = jnp.concatenate([dem, cp], axis=-1)                          # (N,H,W,2*nc)
    w1 = jnp.concatenate([
        jnp.concatenate([params["w1a"], jnp.zeros_like(params["w1a"])], axis=1),
        jnp.concatenate([jnp.zeros_like(params["w1b"]), params["w1b"]], axis=1),
    ], axis=0)                                                        # (ndf, 2*nc, 4, 4)
    b1 = jnp.concatenate([params["b1a"], params["b1b"]])
    xg, wg, bg, m1 = _conv_gemm_operands(x1, w1, b1, 2, 1)
    y1 = _call_single_block(
        _gemm_bias_lrelu_kernel, (xg, wg, bg),
        jax.ShapeDtypeStruct((m1["rows"], wg.shape[1]), MXU_DTYPE))
    out1 = y1.reshape(m1["n"], m1["oh"], m1["ow"], m1["oc"])          # free reshape

    # ---- Layer 2: conv + BatchNorm(batch stats) + LeakyReLU, one kernel ----
    xg, wg, bg, m2 = _conv_gemm_operands(out1, params["w2"], params["b2"], 2, 1)
    gg = _tile_per_channel(params["g2"], m2["pack"])
    be = _tile_per_channel(params["be2"], m2["pack"])
    kern2 = functools.partial(_gemm_bn_lrelu_kernel, pack=m2["pack"], oc=m2["oc"],
                              inv_count=1.0 / float(m2["n"] * m2["oh"] * m2["ow"]))
    y2 = _call_single_block(
        kern2, (xg, wg, bg, gg, be),
        jax.ShapeDtypeStruct((m2["rows"], wg.shape[1]), MXU_DTYPE))
    out2 = y2.reshape(m2["n"], m2["oh"], m2["ow"], m2["oc"])

    # ---- Layers 3 + 4: conv + BN + LReLU + 4x4-valid head + sigmoid ----
    xg, wg, bg, m3 = _conv_gemm_operands(out2, params["w3"], params["b3"], 2, 1)
    gg = _tile_per_channel(params["g3"], m3["pack"])
    be = _tile_per_channel(params["be3"], m3["pack"])
    n, oh, ow, oc, pack, rows = (m3[k] for k in ("n", "oh", "ow", "oc", "pack", "rows"))
    rps = rows // n                                                   # packed rows / sample
    w4_hwc = jnp.transpose(params["w4"][0], (1, 2, 0))                # (KH4, KW4, IC4)
    assert w4_hwc.shape == (oh, ow, oc), "layer-4 conv must consume the full map"
    w4_full = jnp.tile(w4_hwc.reshape(rps, pack * oc).astype(jnp.float32), (n, 1))
    b4_row = jnp.broadcast_to(params["b4"].astype(jnp.float32),
                              (pack * oc,)).reshape(1, -1)
    sel = jnp.asarray(
        (np.arange(rows)[None, :] // rps == np.arange(n)[:, None]).astype(np.float32))
    kern3 = functools.partial(_gemm_bn_lrelu_head_kernel, pack=pack, oc=oc,
                              inv_count=1.0 / float(n * oh * ow))
    yhead = _call_single_block(
        kern3, (xg, wg, bg, gg, be, w4_full, b4_row, sel),
        jax.ShapeDtypeStruct((n, wg.shape[1]), jnp.float32))
    return yhead[:, 0]            # torch.squeeze of the (N,1,1,1) sigmoid output


# ----------------------------------------------------------------------------
# Pure-JAX reference (for correctness check)
# ----------------------------------------------------------------------------
def _ref_conv(x_nhwc, w_oihw, b, stride, pad):
    y = jax.lax.conv_general_dilated(
        x_nhwc, jnp.transpose(w_oihw, (2, 3, 1, 0)),
        window_strides=(stride, stride),
        padding=[(pad, pad), (pad, pad)],
        dimension_numbers=("NHWC", "HWIO", "NHWC"))
    return y + b.reshape(1, 1, 1, -1)


def _ref_bn_lrelu(y, gamma, beta):
    mean = jnp.mean(y, axis=(0, 1, 2))
    var = jnp.var(y, axis=(0, 1, 2))
    yhat = (y - mean) / jnp.sqrt(var + BN_EPS) * gamma + beta
    return jnp.where(yhat >= 0.0, yhat, LEAK * yhat)


def _lrelu(x):
    return jnp.where(x >= 0.0, x, LEAK * x)


def reference_forward(params, dem_nchw, cp_nchw):
    dem = jnp.transpose(dem_nchw, (0, 2, 3, 1)).astype(jnp.float32)
    cp = jnp.transpose(cp_nchw, (0, 2, 3, 1)).astype(jnp.float32)
    o1 = _lrelu(_ref_conv(dem, params["w1a"], params["b1a"], 2, 1))
    o2 = _lrelu(_ref_conv(cp, params["w1b"], params["b1b"], 2, 1))
    o = jnp.concatenate([o1, o2], axis=-1)
    o = _ref_bn_lrelu(_ref_conv(o, params["w2"], params["b2"], 2, 1), params["g2"], params["be2"])
    o = _ref_bn_lrelu(_ref_conv(o, params["w3"], params["b3"], 2, 1), params["g3"], params["be3"])
    o = jax.nn.sigmoid(_ref_conv(o, params["w4"], params["b4"], 1, 0))
    return jnp.squeeze(jnp.transpose(o, (0, 3, 1, 2)))


# ----------------------------------------------------------------------------
# Parameter setup (deterministic, synthetic — not a checkpoint load)
# ----------------------------------------------------------------------------
def init_params(key, nc, ndf):
    half = ndf // 2
    ks = jax.random.split(key, 5)

    def w(k, shape, scale=0.05):
        return (scale * jax.random.normal(k, shape)).astype(jnp.float32)

    return {
        "w1a": w(ks[0], (half, nc, 4, 4)), "b1a": jnp.zeros((half,), jnp.float32),
        "w1b": w(ks[1], (half, nc, 4, 4)), "b1b": jnp.zeros((half,), jnp.float32),
        "w2": w(ks[2], (ndf * 2, ndf, 4, 4)), "b2": jnp.zeros((ndf * 2,), jnp.float32),
        "g2": jnp.ones((ndf * 2,), jnp.float32), "be2": jnp.zeros((ndf * 2,), jnp.float32),
        "w3": w(ks[3], (ndf * 4, ndf * 2, 4, 4)), "b3": jnp.zeros((ndf * 4,), jnp.float32),
        "g3": jnp.ones((ndf * 4,), jnp.float32), "be3": jnp.zeros((ndf * 4,), jnp.float32),
        "w4": w(ks[4], (1, ndf * 4, 4, 4)), "b4": jnp.zeros((1,), jnp.float32),
    }


if __name__ == "__main__":
    # Small shapes consistent with the module: nc=1, spatial 32x32 so that
    # 32 -> 16 -> 8 -> 4 -> (k=4, s=1, p=0) -> 1, exactly as in DCGAN.
    B, NC, H, W = 2, 1, 32, 32
    NDF = 8

    key = jax.random.PRNGKey(0)
    kp, kd, kc = jax.random.split(key, 3)
    params = init_params(kp, NC, NDF)
    dem = jax.random.normal(kd, (B, NC, H, W), dtype=jnp.float32)   # NCHW, like PyTorch
    cp = jax.random.normal(kc, (B, NC, H, W), dtype=jnp.float32)

    out = jax.block_until_ready(jax.jit(discriminator_forward)(params, dem, cp))
    ref = jax.block_until_ready(reference_forward(params, dem, cp))

    assert out.shape == (B,), f"unexpected output shape {out.shape}"
    # bf16 MXU inputs / bf16 intermediate stores with f32 accumulation & stats
    # -> bf16-appropriate tolerance vs the f32 reference.
    np.testing.assert_allclose(np.asarray(out), np.asarray(ref), rtol=2e-2, atol=2e-2)

    print("KERNEL_OK")
</pallas_src>

<mosaic_0001>
module attributes {stable_mosaic.version = 11 : i64} {
  func.func @_gemm_bias_lrelu_kernel(%arg0: i32, %arg1: memref<32x512xbf16, #tpu.memory_space<vmem>>, %arg2: memref<512x128xbf16, #tpu.memory_space<vmem>>, %arg3: memref<1x128xf32, #tpu.memory_space<vmem>>, %arg4: memref<32x128xbf16, #tpu.memory_space<vmem>>) attributes {dimension_semantics = [#tpu.dimension_semantics<arbitrary>], iteration_bounds = array<i64: 1>, scalar_prefetch = 0 : i64, scratch_operands = 0 : i64, tpu.core_type = #tpu.core_type<tc>, window_params = [{pipeline_mode = #tpu.pipeline_mode<synchronous>, transform_indices = @transform_0, window_bounds = array<i64: 32, 512>}, {pipeline_mode = #tpu.pipeline_mode<synchronous>, transform_indices = @transform_1, window_bounds = array<i64: 512, 128>}, {pipeline_mode = #tpu.pipeline_mode<synchronous>, transform_indices = @transform_2, window_bounds = array<i64: 1, 128>}, {pipeline_mode = #tpu.pipeline_mode<synchronous>, transform_indices = @transform_3, window_bounds = array<i64: 32, 128>}]} {
    %c0 = arith.constant 0 : index
    %c0_0 = arith.constant 0 : index
    %0 = vector.load %arg1[%c0, %c0_0] : memref<32x512xbf16, #tpu.memory_space<vmem>>, vector<32x512xbf16>
    %c0_1 = arith.constant 0 : index
    %c0_2 = arith.constant 0 : index
    %1 = vector.load %arg2[%c0_1, %c0_2] : memref<512x128xbf16, #tpu.memory_space<vmem>>, vector<512x128xbf16>
    %cst = arith.constant dense<0.000000e+00> : vector<32x128xf32>
    %2 = tpu.matmul %0, %1, %cst {dimension_numbers = #tpu.dot_dimension_numbers<[1], [0], [0], [1], [0, 0, 1, 1], [], []>} : vector<32x512xbf16>, vector<512x128xbf16>, vector<32x128xf32> -> vector<32x128xf32>
    %c0_3 = arith.constant 0 : index
    %c0_4 = arith.constant 0 : index
    %3 = vector.load %arg3[%c0_3, %c0_4] : memref<1x128xf32, #tpu.memory_space<vmem>>, vector<1x128xf32>
    %4 = vector.broadcast %3 : vector<1x128xf32> to vector<32x128xf32>
    %5 = arith.addf %2, %4 : vector<32x128xf32>
    %cst_5 = arith.constant 0.000000e+00 : f32
    %6 = vector.broadcast %cst_5 : f32 to vector<32x128xf32>
    %7 = arith.cmpf oge, %5, %6 : vector<32x128xf32>
    %cst_6 = arith.constant 2.000000e-01 : f32
    %8 = vector.broadcast %cst_6 : f32 to vector<32x128xf32>
    %9 = arith.mulf %8, %5 : vector<32x128xf32>
    %10 = arith.select %7, %5, %9 : vector<32x128xi1>, vector<32x128xf32>
    %11 = arith.truncf %10 : vector<32x128xf32> to vector<32x128xbf16>
    %c0_7 = arith.constant 0 : index
    %c0_8 = arith.constant 0 : index
    %12 = vector.load %arg4[%c0_7, %c0_8] : memref<32x128xbf16, #tpu.memory_space<vmem>>, vector<32x128xbf16>
    tpu.vector_store %arg4[%c0_7, %c0_8], %11 {strides = array<i32>} : memref<32x128xbf16, #tpu.memory_space<vmem>>, vector<32x128xbf16>,
    return
  }
  func.func @transform_0(%arg0: i32) -> (i32, i32) {
    %c0_i32 = arith.constant 0 : i32
    %c0_i32_0 = arith.constant 0 : i32
    %c0_i32_1 = arith.constant 0 : i32
    return %c0_i32, %c0_i32_0 : i32, i32
  }
  func.func @transform_1(%arg0: i32) -> (i32, i32) {
    %c0_i32 = arith.constant 0 : i32
    %c0_i32_0 = arith.constant 0 : i32
    %c0_i32_1 = arith.constant 0 : i32
    return %c0_i32, %c0_i32_0 : i32, i32
  }
  func.func @transform_2(%arg0: i32) -> (i32, i32) {
    %c0_i32 = arith.constant 0 : i32
    %c0_i32_0 = arith.constant 0 : i32
    %c0_i32_1 = arith.constant 0 : i32
    return %c0_i32, %c0_i32_0 : i32, i32
  }
  func.func @transform_3(%arg0: i32) -> (i32, i32) {
    %c0_i32 = arith.constant 0 : i32
    %c0_i32_0 = arith.constant 0 : i32
    %c0_i32_1 = arith.constant 0 : i32
    return %c0_i32, %c0_i32_0 : i32, i32
  }
}

module attributes {stable_mosaic.version = 11 : i64} {
  func.func @_gemm_bn_lrelu_kernel(%arg0: i32, %arg1: memref<16x1024xbf16, #tpu.memory_space<vmem>>, %arg2: memref<1024x128xbf16, #tpu.memory_space<vmem>>, %arg3: memref<1x128xf32, #tpu.memory_space<vmem>>, %arg4: memref<1x128xf32, #tpu.memory_space<vmem>>, %arg5: memref<1x128xf32, #tpu.memory_space<vmem>>, %arg6: memref<16x128xbf16, #tpu.memory_space<vmem>>) attributes {dimension_semantics = [#tpu.dimension_semantics<arbitrary>], iteration_bounds = array<i64: 1>, scalar_prefetch = 0 : i64, scratch_operands = 0 : i64, tpu.core_type = #tpu.core_type<tc>, window_params = [{pipeline_mode = #tpu.pipeline_mode<synchronous>, transform_indices = @transform_0, window_bounds = array<i64: 16, 1024>}, {pipeline_mode = #tpu.pipeline_mode<synchronous>, transform_indices = @transform_1, window_bounds = array<i64: 1024, 128>}, {pipeline_mode = #tpu.pipeline_mode<synchronous>, transform_indices = @transform_2, window_bounds = array<i64: 1, 128>}, {pipeline_mode = #tpu.pipeline_mode<synchronous>, transform_indices = @transform_3, window_bounds = array<i64: 1, 128>}, {pipeline_mode = #tpu.pipeline_mode<synchronous>, transform_indices = @transform_4, window_bounds = array<i64: 1, 128>}, {pipeline_mode = #tpu.pipeline_mode<synchronous>, transform_indices = @transform_5, window_bounds = array<i64: 16, 128>}]} {
    %c0 = arith.constant 0 : index
    %c0_0 = arith.constant 0 : index
    %0 = vector.load %arg1[%c0, %c0_0] : memref<16x1024xbf16, #tpu.memory_space<vmem>>, vector<16x1024xbf16>
    %c0_1 = arith.constant 0 : index
    %c0_2 = arith.constant 0 : index
    %1 = vector.load %arg2[%c0_1, %c0_2] : memref<1024x128xbf16, #tpu.memory_space<vmem>>, vector<1024x128xbf16>
    %cst = arith.constant dense<0.000000e+00> : vector<16x128xf32>
    %2 = tpu.matmul %0, %1, %cst {dimension_numbers = #tpu.dot_dimension_numbers<[1], [0], [0], [1], [0, 0, 1, 1], [], []>} : vector<16x1024xbf16>, vector<1024x128xbf16>, vector<16x128xf32> -> vector<16x128xf32>
    %c0_3 = arith.constant 0 : index
    %c0_4 = arith.constant 0 : index
    %3 = vector.load %arg3[%c0_3, %c0_4] : memref<1x128xf32, #tpu.memory_space<vmem>>, vector<1x128xf32>
    %4 = vector.broadcast %3 : vector<1x128xf32> to vector<16x128xf32>
    %5 = arith.addf %2, %4 : vector<16x128xf32>
    %c0_5 = arith.constant 0 : index
    %c0_6 = arith.constant 0 : index
    %6 = vector.load %arg4[%c0_5, %c0_6] : memref<1x128xf32, #tpu.memory_space<vmem>>, vector<1x128xf32>
    %c0_7 = arith.constant 0 : index
    %c0_8 = arith.constant 0 : index
    %7 = vector.load %arg5[%c0_7, %c0_8] : memref<1x128xf32, #tpu.memory_space<vmem>>, vector<1x128xf32>
    %cst_9 = arith.constant dense<0.000000e+00> : vector<128xf32>
    %8 = vector.multi_reduction <add>, %5, %cst_9 [0] : vector<16x128xf32> to vector<128xf32>
    %9 = vector.shape_cast %8 : vector<128xf32> to vector<1x128xf32>
    %c16_i32 = arith.constant 16 : i32
    %10 = tpu.dynamic_rotate %9 by %c16_i32 dim 1 : vector<1x128xf32>, i32 -> vector<1x128xf32>
    %11 = arith.addf %9, %10 : vector<1x128xf32>
    %c32_i32 = arith.constant 32 : i32
    %12 = tpu.dynamic_rotate %9 by %c32_i32 dim 1 : vector<1x128xf32>, i32 -> vector<1x128xf32>
    %13 = arith.addf %11, %12 : vector<1x128xf32>
    %c48_i32 = arith.constant 48 : i32
    %14 = tpu.dynamic_rotate %9 by %c48_i32 dim 1 : vector<1x128xf32>, i32 -> vector<1x128xf32>
    %15 = arith.addf %13, %14 : vector<1x128xf32>
    %c64_i32 = arith.constant 64 : i32
    %16 = tpu.dynamic_rotate %9 by %c64_i32 dim 1 : vector<1x128xf32>, i32 -> vector<1x128xf32>
    %17 = arith.addf %15, %16 : vector<1x128xf32>
    %c80_i32 = arith.constant 80 : i32
    %18 = tpu.dynamic_rotate %9 by %c80_i32 dim 1 : vector<1x128xf32>, i32 -> vector<1x128xf32>
    %19 = arith.addf %17, %18 : vector<1x128xf32>
    %c96_i32 = arith.constant 96 : i32
    %20 = tpu.dynamic_rotate %9 by %c96_i32 dim 1 : vector<1x128xf32>, i32 -> vector<1x128xf32>
    %21 = arith.addf %19, %20 : vector<1x128xf32>
    %c112_i32 = arith.constant 112 : i32
    %22 = tpu.dynamic_rotate %9 by %c112_i32 dim 1 : vector<1x128xf32>, i32 -> vector<1x128xf32>
    %23 = arith.addf %21, %22 : vector<1x128xf32>
    %cst_10 = arith.constant 7.812500e-03 : f32
    %24 = vector.broadcast %cst_10 : f32 to vector<1x128xf32>
    %25 = arith.mulf %23, %24 : vector<1x128xf32>
    %26 = vector.broadcast %25 : vector<1x128xf32> to vector<16x128xf32>
    %27 = arith.subf %5, %26 : vector<16x128xf32>
    %28 = arith.mulf %27, %27 : vector<16x128xf32>
    %cst_11 = arith.constant dense<0.000000e+00> : vector<128xf32>
    %29 = vector.multi_reduction <add>, %28, %cst_11 [0] : vector<16x128xf32> to vector<128xf32>
    %30 = vector.shape_cast %29 : vector<128xf32> to vector<1x128xf32>
    %c16_i32_12 = arith.constant 16 : i32
    %31 = tpu.dynamic_rotate %30 by %c16_i32_12 dim 1 : vector<1x128xf32>, i32 -> vector<1x128xf32>
    %32 = arith.addf %30, %31 : vector<1x128xf32>
    %c32_i32_13 = arith.constant 32 : i32
    %33 = tpu.dynamic_rotate %30 by %c32_i32_13 dim 1 : vector<1x128xf32>, i32 -> vector<1x128xf32>
    %34 = arith.addf %32, %33 : vector<1x128xf32>
    %c48_i32_14 = arith.constant 48 : i32
    %35 = tpu.dynamic_rotate %30 by %c48_i32_14 dim 1 : vector<1x128xf32>, i32 -> vector<1x128xf32>
    %36 = arith.addf %34, %35 : vector<1x128xf32>
    %c64_i32_15 = arith.constant 64 : i32
    %37 = tpu.dynamic_rotate %30 by %c64_i32_15 dim 1 : vector<1x128xf32>, i32 -> vector<1x128xf32>
    %38 = arith.addf %36, %37 : vector<1x128xf32>
    %c80_i32_16 = arith.constant 80 : i32
    %39 = tpu.dynamic_rotate %30 by %c80_i32_16 dim 1 : vector<1x128xf32>, i32 -> vector<1x128xf32>
    %40 = arith.addf %38, %39 : vector<1x128xf32>
    %c96_i32_17 = arith.constant 96 : i32
    %41 = tpu.dynamic_rotate %30 by %c96_i32_17 dim 1 : vector<1x128xf32>, i32 -> vector<1x128xf32>
    %42 = arith.addf %40, %41 : vector<1x128xf32>
    %c112_i32_18 = arith.constant 112 : i32
    %43 = tpu.dynamic_rotate %30 by %c112_i32_18 dim 1 : vector<1x128xf32>, i32 -> vector<1x128xf32>
    %44 = arith.addf %42, %43 : vector<1x128xf32>
    %cst_19 = arith.constant 7.812500e-03 : f32
    %45 = vector.broadcast %cst_19 : f32 to vector<1x128xf32>
    %46 = arith.mulf %44, %45 : vector<1x128xf32>
    %cst_20 = arith.constant 9.99999974E-6 : f32
    %47 = vector.broadcast %cst_20 : f32 to vector<1x128xf32>
    %48 = arith.addf %46, %47 : vector<1x128xf32>
    %49 = math.rsqrt %48 : vector<1x128xf32>
    %50 = arith.mulf %6, %49 : vector<1x128xf32>
    %51 = vector.broadcast %50 : vector<1x128xf32> to vector<16x128xf32>
    %52 = arith.mulf %27, %51 : vector<16x128xf32>
    %53 = vector.broadcast %7 : vector<1x128xf32> to vector<16x128xf32>
    %54 = arith.addf %52, %53 : vector<16x128xf32>
    %cst_21 = arith.constant 0.000000e+00 : f32
    %55 = vector.broadcast %cst_21 : f32 to vector<16x128xf32>
    %56 = arith.cmpf oge, %54, %55 : vector<16x128xf32>
    %cst_22 = arith.constant 2.000000e-01 : f32
    %57 = vector.broadcast %cst_22 : f32 to vector<16x128xf32>
    %58 = arith.mulf %57, %54 : vector<16x128xf32>
    %59 = arith.select %56, %54, %58 : vector<16x128xi1>, vector<16x128xf32>
    %60 = arith.truncf %59 : vector<16x128xf32> to vector<16x128xbf16>
    %c0_23 = arith.constant 0 : index
    %c0_24 = arith.constant 0 : index
    %61 = vector.load %arg6[%c0_23, %c0_24] : memref<16x128xbf16, #tpu.memory_space<vmem>>, vector<16x128xbf16>
    tpu.vector_store %arg6[%c0_23, %c0_24], %60 {strides = array<i32>} : memref<16x128xbf16, #tpu.memory_space<vmem>>, vector<16x128xbf16>,
    return
  }
  func.func @transform_0(%arg0: i32) -> (i32, i32) {
    %c0_i32 = arith.constant 0 : i32
    %c0_i32_0 = arith.constant 0 : i32
    %c0_i32_1 = arith.constant 0 : i32
    return %c0_i32, %c0_i32_0 : i32, i32
  }
  func.func @transform_1(%arg0: i32) -> (i32, i32) {
    %c0_i32 = arith.constant 0 : i32
    %c0_i32_0 = arith.constant 0 : i32
    %c0_i32_1 = arith.constant 0 : i32
    return %c0_i32, %c0_i32_0 : i32, i32
  }
  func.func @transform_2(%arg0: i32) -> (i32, i32) {
    %c0_i32 = arith.constant 0 : i32
    %c0_i32_0 = arith.constant 0 : i32
    %c0_i32_1 = arith.constant 0 : i32
    return %c0_i32, %c0_i32_0 : i32, i32
  }
  func.func @transform_3(%arg0: i32) -> (i32, i32) {
    %c0_i32 = arith.constant 0 : i32
    %c0_i32_0 = arith.constant 0 : i32
    %c0_i32_1 = arith.constant 0 : i32
    return %c0_i32, %c0_i32_0 : i32, i32
  }
  func.func @transform_4(%arg0: i32) -> (i32, i32) {
    %c0_i32 = arith.constant 0 : i32
    %c0_i32_0 = arith.constant 0 : i32
    %c0_i32_1 = arith.constant 0 : i32
    return %c0_i32, %c0_i32_0 : i32, i32
  }
  func.func @transform_5(%arg0: i32) -> (i32, i32) {
    %c0_i32 = arith.constant 0 : i32
    %c0_i32_0 = arith.constant 0 : i32
    %c0_i32_1 = arith.constant 0 : i32
    return %c0_i32, %c0_i32_0 : i32, i32
  }
}

module attributes {stable_mosaic.version = 11 : i64} {
  func.func @_gemm_bn_lrelu_head_kernel(%arg0: i32, %arg1: memref<8x1024xbf16, #tpu.memory_space<vmem>>, %arg2: memref<1024x128xbf16, #tpu.memory_space<vmem>>, %arg3: memref<1x128xf32, #tpu.memory_space<vmem>>, %arg4: memref<1x128xf32, #tpu.memory_space<vmem>>, %arg5: memref<1x128xf32, #tpu.memory_space<vmem>>, %arg6: memref<8x128xf32, #tpu.memory_space<vmem>>, %arg7: memref<1x128xf32, #tpu.memory_space<vmem>>, %arg8: memref<2x8xf32, #tpu.memory_space<vmem>>, %arg9: memref<2x128xf32, #tpu.memory_space<vmem>>) attributes {dimension_semantics = [#tpu.dimension_semantics<arbitrary>], iteration_bounds = array<i64: 1>, scalar_prefetch = 0 : i64, scratch_operands = 0 : i64, tpu.core_type = #tpu.core_type<tc>, window_params = [{pipeline_mode = #tpu.pipeline_mode<synchronous>, transform_indices = @transform_0, window_bounds = array<i64: 8, 1024>}, {pipeline_mode = #tpu.pipeline_mode<synchronous>, transform_indices = @transform_1, window_bounds = array<i64: 1024, 128>}, {pipeline_mode = #tpu.pipeline_mode<synchronous>, transform_indices = @transform_2, window_bounds = array<i64: 1, 128>}, {pipeline_mode = #tpu.pipeline_mode<synchronous>, transform_indices = @transform_3, window_bounds = array<i64: 1, 128>}, {pipeline_mode = #tpu.pipeline_mode<synchronous>, transform_indices = @transform_4, window_bounds = array<i64: 1, 128>}, {pipeline_mode = #tpu.pipeline_mode<synchronous>, transform_indices = @transform_5, window_bounds = array<i64: 8, 128>}, {pipeline_mode = #tpu.pipeline_mode<synchronous>, transform_indices = @transform_6, window_bounds = array<i64: 1, 128>}, {pipeline_mode = #tpu.pipeline_mode<synchronous>, transform_indices = @transform_7, window_bounds = array<i64: 2, 8>}, {pipeline_mode = #tpu.pipeline_mode<synchronous>, transform_indices = @transform_8, window_bounds = array<i64: 2, 128>}]} {
    %c0 = arith.constant 0 : index
    %c0_0 = arith.constant 0 : index
    %0 = vector.load %arg1[%c0, %c0_0] : memref<8x1024xbf16, #tpu.memory_space<vmem>>, vector<8x1024xbf16>
    %c0_1 = arith.constant 0 : index
    %c0_2 = arith.constant 0 : index
    %1 = vector.load %arg2[%c0_1, %c0_2] : memref<1024x128xbf16, #tpu.memory_space<vmem>>, vector<1024x128xbf16>
    %cst = arith.constant dense<0.000000e+00> : vector<8x128xf32>
    %2 = tpu.matmul %0, %1, %cst {dimension_numbers = #tpu.dot_dimension_numbers<[1], [0], [0], [1], [0, 0, 1, 1], [], []>} : vector<8x1024xbf16>, vector<1024x128xbf16>, vector<8x128xf32> -> vector<8x128xf32>
    %c0_3 = arith.constant 0 : index
    %c0_4 = arith.constant 0 : index
    %3 = vector.load %arg3[%c0_3, %c0_4] : memref<1x128xf32, #tpu.memory_space<vmem>>, vector<1x128xf32>
    %4 = vector.broadcast %3 : vector<1x128xf32> to vector<8x128xf32>
    %5 = arith.addf %2, %4 : vector<8x128xf32>
    %c0_5 = arith.constant 0 : index
    %c0_6 = arith.constant 0 : index
    %6 = vector.load %arg4[%c0_5, %c0_6] : memref<1x128xf32, #tpu.memory_space<vmem>>, vector<1x128xf32>
    %c0_7 = arith.constant 0 : index
    %c0_8 = arith.constant 0 : index
    %7 = vector.load %arg5[%c0_7, %c0_8] : memref<1x128xf32, #tpu.memory_space<vmem>>, vector<1x128xf32>
    %cst_9 = arith.constant dense<0.000000e+00> : vector<128xf32>
    %8 = vector.multi_reduction <add>, %5, %cst_9 [0] : vector<8x128xf32> to vector<128xf32>
    %9 = vector.shape_cast %8 : vector<128xf32> to vector<1x128xf32>
    %c32_i32 = arith.constant 32 : i32
    %10 = tpu.dynamic_rotate %9 by %c32_i32 dim 1 : vector<1x128xf32>, i32 -> vector<1x128xf32>
    %11 = arith.addf %9, %10 : vector<1x128xf32>
    %c64_i32 = arith.constant 64 : i32
    %12 = tpu.dynamic_rotate %9 by %c64_i32 dim 1 : vector<1x128xf32>, i32 -> vector<1x128xf32>
    %13 = arith.addf %11, %12 : vector<1x128xf32>
    %c96_i32 = arith.constant 96 : i32
    %14 = tpu.dynamic_rotate %9 by %c96_i32 dim 1 : vector<1x128xf32>, i32 -> vector<1x128xf32>
    %15 = arith.addf %13, %14 : vector<1x128xf32>
    %cst_10 = arith.constant 3.125000e-02 : f32
    %16 = vector.broadcast %cst_10 : f32 to vector<1x128xf32>
    %17 = arith.mulf %15, %16 : vector<1x128xf32>
    %18 = vector.broadcast %17 : vector<1x128xf32> to vector<8x128xf32>
    %19 = arith.subf %5, %18 : vector<8x128xf32>
    %20 = arith.mulf %19, %19 : vector<8x128xf32>
    %cst_11 = arith.constant dense<0.000000e+00> : vector<128xf32>
    %21 = vector.multi_reduction <add>, %20, %cst_11 [0] : vector<8x128xf32> to vector<128xf32>
    %22 = vector.shape_cast %21 : vector<128xf32> to vector<1x128xf32>
    %c32_i32_12 = arith.constant 32 : i32
    %23 = tpu.dynamic_rotate %22 by %c32_i32_12 dim 1 : vector<1x128xf32>, i32 -> vector<1x128xf32>
    %24 = arith.addf %22, %23 : vector<1x128xf32>
    %c64_i32_13 = arith.constant 64 : i32
    %25 = tpu.dynamic_rotate %22 by %c64_i32_13 dim 1 : vector<1x128xf32>, i32 -> vector<1x128xf32>
    %26 = arith.addf %24, %25 : vector<1x128xf32>
    %c96_i32_14 = arith.constant 96 : i32
    %27 = tpu.dynamic_rotate %22 by %c96_i32_14 dim 1 : vector<1x128xf32>, i32 -> vector<1x128xf32>
    %28 = arith.addf %26, %27 : vector<1x128xf32>
    %cst_15 = arith.constant 3.125000e-02 : f32
    %29 = vector.broadcast %cst_15 : f32 to vector<1x128xf32>
    %30 = arith.mulf %28, %29 : vector<1x128xf32>
    %cst_16 = arith.constant 9.99999974E-6 : f32
    %31 = vector.broadcast %cst_16 : f32 to vector<1x128xf32>
    %32 = arith.addf %30, %31 : vector<1x128xf32>
    %33 = math.rsqrt %32 : vector<1x128xf32>
    %34 = arith.mulf %6, %33 : vector<1x128xf32>
    %35 = vector.broadcast %34 : vector<1x128xf32> to vector<8x128xf32>
    %36 = arith.mulf %19, %35 : vector<8x128xf32>
    %37 = vector.broadcast %7 : vector<1x128xf32> to vector<8x128xf32>
    %38 = arith.addf %36, %37 : vector<8x128xf32>
    %cst_17 = arith.constant 0.000000e+00 : f32
    %39 = vector.broadcast %cst_17 : f32 to vector<8x128xf32>
    %40 = arith.cmpf oge, %38, %39 : vector<8x128xf32>
    %cst_18 = arith.constant 2.000000e-01 : f32
    %41 = vector.broadcast %cst_18 : f32 to vector<8x128xf32>
    %42 = arith.mulf %41, %38 : vector<8x128xf32>
    %43 = arith.select %40, %38, %42 : vector<8x128xi1>, vector<8x128xf32>
    %c0_19 = arith.constant 0 : index
    %c0_20 = arith.constant 0 : index
    %44 = vector.load %arg6[%c0_19, %c0_20] : memref<8x128xf32, #tpu.memory_space<vmem>>, vector<8x128xf32>
    %45 = arith.mulf %43, %44 : vector<8x128xf32>
    %c0_21 = arith.constant 0 : index
    %c0_22 = arith.constant 0 : index
    %46 = vector.load %arg8[%c0_21, %c0_22] : memref<2x8xf32, #tpu.memory_space<vmem>>, vector<2x8xf32>
    %cst_23 = arith.constant dense<0.000000e+00> : vector<2x128xf32>
    %47 = tpu.matmul %46, %45, %cst_23 {dimension_numbers = #tpu.dot_dimension_numbers<[1], [0], [0], [1], [0, 0, 1, 1], [], []>} : vector<2x8xf32>, vector<8x128xf32>, vector<2x128xf32> -> vector<2x128xf32>
    %cst_24 = arith.constant dense<0.000000e+00> : vector<2xf32>
    %48 = vector.multi_reduction <add>, %47, %cst_24 [1] : vector<2x128xf32> to vector<2xf32>
    %49 = vector.shape_cast %48 : vector<2xf32> to vector<2x1xf32>
    %50 = vector.shape_cast %49 : vector<2x1xf32> to vector<2x1xf32>
    %51 = vector.broadcast %50 : vector<2x1xf32> to vector<2x128xf32>
    %c0_25 = arith.constant 0 : index
    %c0_26 = arith.constant 0 : index
    %52 = vector.load %arg7[%c0_25, %c0_26] : memref<1x128xf32, #tpu.memory_space<vmem>>, vector<1x128xf32>
    %53 = vector.broadcast %52 : vector<1x128xf32> to vector<2x128xf32>
    %54 = arith.addf %51, %53 : vector<2x128xf32>
    %cst_27 = arith.constant 0.000000e+00 : f32
    %55 = vector.broadcast %cst_27 : f32 to vector<2x128xf32>
    %56 = arith.subf %55, %54 : vector<2x128xf32>
    %57 = math.exp %56 : vector<2x128xf32>
    %cst_28 = arith.constant 1.000000e+00 : f32
    %58 = vector.broadcast %cst_28 : f32 to vector<2x128xf32>
    %59 = arith.addf %58, %57 : vector<2x128xf32>
    %60 = tpu.reciprocal %59 {approx = true} : vector<2x128xf32> -> vector<2x128xf32>
    %c0_29 = arith.constant 0 : index
    %c0_30 = arith.constant 0 : index
    %61 = vector.load %arg9[%c0_29, %c0_30] : memref<2x128xf32, #tpu.memory_space<vmem>>, vector<2x128xf32>
    tpu.vector_store %arg9[%c0_29, %c0_30], %60 {strides = array<i32>} : memref<2x128xf32, #tpu.memory_space<vmem>>, vector<2x128xf32>,
    return
  }
  func.func @transform_0(%arg0: i32) -> (i32, i32) {
    %c0_i32 = arith.constant 0 : i32
    %c0_i32_0 = arith.constant 0 : i32
    %c0_i32_1 = arith.constant 0 : i32
    return %c0_i32, %c0_i32_0 : i32, i32
  }
  func.func @transform_1(%arg0: i32) -> (i32, i32) {
    %c0_i32 = arith.constant 0 : i32
    %c0_i32_0 = arith.constant 0 : i32
    %c0_i32_1 = arith.constant 0 : i32
    return %c0_i32, %c0_i32_0 : i32, i32
  }
  func.func @transform_2(%arg0: i32) -> (i32, i32) {
    %c0_i32 = arith.constant 0 : i32
    %c0_i32_0 = arith.constant 0 : i32
    %c0_i32_1 = arith.constant 0 : i32
    return %c0_i32, %c0_i32_0 : i32, i32
  }
  func.func @transform_3(%arg0: i32) -> (i32, i32) {
    %c0_i32 = arith.constant 0 : i32
    %c0_i32_0 = arith.constant 0 : i32
    %c0_i32_1 = arith.constant 0 : i32
    return %c0_i32, %c0_i32_0 : i32, i32
  }
  func.func @transform_4(%arg0: i32) -> (i32, i32) {
    %c0_i32 = arith.constant 0 : i32
    %c0_i32_0 = arith.constant 0 : i32
    %c0_i32_1 = arith.constant 0 : i32
    return %c0_i32, %c0_i32_0 : i32, i32
  }
  func.func @transform_5(%arg0: i32) -> (i32, i32) {
    %c0_i32 = arith.constant 0 : i32
    %c0_i32_0 = arith.constant 0 : i32
    %c0_i32_1 = arith.constant 0 : i32
    return %c0_i32, %c0_i32_0 : i32, i32
  }
  func.func @transform_6(%arg0: i32) -> (i32, i32) {
    %c0_i32 = arith.constant 0 : i32
    %c0_i32_0 = arith.constant 0 : i32
    %c0_i32_1 = arith.constant 0 : i32
    return %c0_i32, %c0_i32_0 : i32, i32
  }
  func.func @transform_7(%arg0: i32) -> (i32, i32) {
    %c0_i32 = arith.constant 0 : i32
    %c0_i32_0 = arith.constant 0 : i32
    %c0_i32_1 = arith.constant 0 : i32
    return %c0_i32, %c0_i32_0 : i32, i32
  }
  func.func @transform_8(%arg0: i32) -> (i32, i32) {
    %c0_i32 = arith.constant 0 : i32
    %c0_i32_0 = arith.constant 0 : i32
    %c0_i32_1 = arith.constant 0 : i32
    return %c0_i32, %c0_i32_0 : i32, i32
  }
}

</mosaic_0001>

<llo_original>
// kernel: tile.42
$region0: #{tile.42}
  #allocation0 [shape = 's32[1]{0}', space=sflag, size = 0x4, scoped, tag = 'scoped memory for tile.42']
  %s0 = inlined_call_operand.vmem [shape: f32[8], index: 0, kind: input, shape index: {}]
  %s1 = inlined_call_operand.vmem [shape: f32[16,8], index: 1, kind: output, shape index: {}]
  // Predicated region
  $region2: #{tile.42} parent=0 // pred_check
    _
  $region3: #{tile.42} parent=0 // pred_check_branch
    %3 = sbr.rel (0) target = $region5
  $region4: #{tile.42} parent=0 // pred_region
    _
  $region5: #{tile.42} parent=0 // pred_fallthru
    _
  %v4 = vld [vmem:[%s0] ss:$0 sm:$0xff]
  %5 = vst [vmem:[%s1] sm:$0xff] %v4
  %s6 = scalar_lea.vmem %s1, 8
  %7 = vst [vmem:[%s6] sm:$0xff] %v4

// kernel: tile.43
$region0: #{tile.43}
  %s0 = inlined_call_operand.vmem [shape: f32[16,8], index: 0, kind: input, shape index: {}]
  %s1 = inlined_call_operand.vmem [shape: f32[1,128], index: 1, kind: output, shape index: {}]
  $region1: #{tile.43} parent=0
    #allocation0 [shape = 'u8[4096]{0}', space=vmem, size = 0x1000, scoped, tag = 'scoped mem for output reshape']
    %v2 = vld [vmem:[%s0] sm:$0x1]
    %vm3 = vcmask 64512
    %4 = vst.msk [vmem:[#allocation0] sm:$0x1] %vm3, %v2
    %s5 = scalar_lea.vmem %s0, 15
    %v6 = vld [vmem:[%s5] sm:$0x1]
    %7 = vrot.lane.b32.xlu0 %v6, 120
    %v8 = vpop.permute.xlu0 %7
    %vm9 = vcmask 1048512
    %10 = vst.msk [vmem:[#allocation0] sm:$0x1] %vm9, %v8
    %s11 = scalar_lea.vmem %s0, 14
    %v12 = vld [vmem:[%s11] sm:$0x1]
    %13 = vrot.lane.b32.xlu0 %v12, 112
    %v14 = vpop.permute.xlu0 %13
    %vm15 = vcmask 982912
    %16 = vst.msk [vmem:[#allocation0] sm:$0x1] %vm15, %v14
    %s17 = scalar_lea.vmem %s0, 13
    %v18 = vld [vmem:[%s17] sm:$0x1]
    %19 = vrot.lane.b32.xlu0 %v18, 104
    %v20 = vpop.permute.xlu0 %19
    %vm21 = vcmask 917312
    %22 = vst.msk [vmem:[#allocation0] sm:$0x1] %vm21, %v20
    %s23 = scalar_lea.vmem %s0, 12
    %v24 = vld [vmem:[%s23] sm:$0x1]
    %25 = vrot.lane.b32.xlu0 %v24, 96
    %v26 = vpop.permute.xlu0 %25
    %vm27 = vcmask 851712
    %28 = vst.msk [vmem:[#allocation0] sm:$0x1] %vm27, %v26
    %s29 = scalar_lea.vmem %s0, 11
    %v30 = vld [vmem:[%s29] sm:$0x1]
    %31 = vrot.lane.b32.xlu0 %v30, 88
    %v32 = vpop.permute.xlu0 %31
    %vm33 = vcmask 786112
    %34 = vst.msk [vmem:[#allocation0] sm:$0x1] %vm33, %v32
    %s35 = scalar_lea.vmem %s0, 10
    %v36 = vld [vmem:[%s35] sm:$0x1]
    %37 = vrot.lane.b32.xlu0 %v36, 80
    %v38 = vpop.permute.xlu0 %37
    %vm39 = vcmask 720512
    %40 = vst.msk [vmem:[#allocation0] sm:$0x1] %vm39, %v38
    %s41 = scalar_lea.vmem %s0, 9
    %v42 = vld [vmem:[%s41] sm:$0x1]
    %43 = vrot.lane.b32.xlu0 %v42, 72
    %v44 = vpop.permute.xlu0 %43
    %vm45 = vcmask 654912
    %46 = vst.msk [vmem:[#allocation0] sm:$0x1] %vm45, %v44
    %s47 = scalar_lea.vmem %s0, 8
    %v48 = vld [vmem:[%s47] sm:$0x1]
    %49 = vrot.lane.b32.xlu0 %v48, 64
    %v50 = vpop.permute.xlu0 %49
    %vm51 = vcmask 589312
    %52 = vst.msk [vmem:[#allocation0] sm:$0x1] %vm51, %v50
    %s53 = scalar_lea.vmem %s0, 7
    %v54 = vld [vmem:[%s53] sm:$0x1]
    %55 = vrot.lane.b32.xlu0 %v54, 56
    %v56 = vpop.permute.xlu0 %55
    %vm57 = vcmask 523712
    %58 = vst.msk [vmem:[#allocation0] sm:$0x1] %vm57, %v56
    %s59 = scalar_lea.vmem %s0, 6
    %v60 = vld [vmem:[%s59] sm:$0x1]
    %61 = vrot.lane.b32.xlu0 %v60, 48
    %v62 = vpop.permute.xlu0 %61
    %vm63 = vcmask 458112
    %64 = vst.msk [vmem:[#allocation0] sm:$0x1] %vm63, %v62
    %s65 = scalar_lea.vmem %s0, 5
    %v66 = vld [vmem:[%s65] sm:$0x1]
    %67 = vrot.lane.b32.xlu0 %v66, 40
    %v68 = vpop.permute.xlu0 %67
    %vm69 = vcmask 392512
    %70 = vst.msk [vmem:[#allocation0] sm:$0x1] %vm69, %v68
    %s71 = scalar_lea.vmem %s0, 4
    %v72 = vld [vmem:[%s71] sm:$0x1]
    %73 = vrot.lane.b32.xlu0 %v72, 32
    %v74 = vpop.permute.xlu0 %73
    %vm75 = vcmask 326912
    %76 = vst.msk [vmem:[#allocation0] sm:$0x1] %vm75, %v74
    %s77 = scalar_lea.vmem %s0, 3
    %v78 = vld [vmem:[%s77] sm:$0x1]
    %79 = vrot.lane.b32.xlu0 %v78, 24
    %v80 = vpop.permute.xlu0 %79
    %vm81 = vcmask 261312
    %82 = vst.msk [vmem:[#allocation0] sm:$0x1] %vm81, %v80
    %s83 = scalar_lea.vmem %s0, 2
    %v84 = vld [vmem:[%s83] sm:$0x1]
    %85 = vrot.lane.b32.xlu0 %v84, 16
    %v86 = vpop.permute.xlu0 %85
    %vm87 = vcmask 195712
    %88 = vst.msk [vmem:[#allocation0] sm:$0x1] %vm87, %v86
    %s89 = scalar_lea.vmem %s0, 1
    %v90 = vld [vmem:[%s89] sm:$0x1]
    %91 = vrot.lane.b32.xlu0 %v90, 8
    %v92 = vpop.permute.xlu0 %91
    %vm93 = vcmask 130112
    %94 = vst.msk [vmem:[#allocation0] sm:$0x1] %vm93, %v92
    %s96 = sshll.u32 1, 1
    %s97 = ssub.s32 %s96, 1
    %v99 = vld [vmem:[#allocation0] sm:%s97]
    %s100 = sshll.u32 1, 1
    %s101 = ssub.s32 %s100, 1
    %102 = vst [vmem:[%s1] sm:%s101] %v99

// kernel: discriminator_forward.3
$region0: #{discriminator_forward.3}
  #allocation0 [shape = 'u32[]', space=smem, size = 0x4, offset = 0x4, fixed_abs, tag = 'smem constant byte address 0x4 - core index']
  #allocation1 [shape = 'u32[144,128]{1,0:T(1,128)}', space=vmem, size = 0x12000, scoped, tag = 'internal scratch']
  %s0 = inlined_call_operand.vmem [shape: bf16[32,512], index: 0, kind: input, shape index: {}]
  %s1 = inlined_call_operand.vmem [shape: bf16[512,128], index: 1, kind: input, shape index: {}]
  %s2 = inlined_call_operand.vmem [shape: f32[1,128], index: 2, kind: input, shape index: {}]
  %s3 = inlined_call_operand.vmem [shape: bf16[32,128], index: 3, kind: output, shape index: {}]
  %s4 = sld [smem:[#allocation0]]
  $region22: #{discriminator_forward.3} parent=0
    _
  %s6 = ssub.s32 1, %s4
  %s7 = scalar_select 0, %s6, %s4
  // Predicated region
  $region2: #{discriminator_forward.3} parent=0 // pred_check
    _
  $region3: #{discriminator_forward.3} parent=0 // pred_check_branch
    %9 = sbr.rel (0) target = $region5
  $region4: #{discriminator_forward.3} parent=0 // pred_region
    _
  $region5: #{discriminator_forward.3} parent=0 // pred_fallthru
    _
  // Predicated region
  $region6: #{discriminator_forward.3} parent=0 // pred_check
    _
  $region7: #{discriminator_forward.3} parent=0 // pred_check_branch
    %11 = sbr.rel (0) target = $region9
  $region8: #{discriminator_forward.3} parent=0 // pred_region
    _
  $region9: #{discriminator_forward.3} parent=0 // pred_fallthru
    _
  // Predicated region
  $region10: #{discriminator_forward.3} parent=0 // pred_check
    _
  $region11: #{discriminator_forward.3} parent=0 // pred_check_branch
    %13 = sbr.rel (0) target = $region13
  $region12: #{discriminator_forward.3} parent=0 // pred_region
    _
  $region13: #{discriminator_forward.3} parent=0 // pred_fallthru
    _
  %v15 = vld [vmem:[%s0] sm:$0xff]
  %v16 = vld [vmem:[%s0 + $0x8] sm:$0xff]
  %v17 = vld [vmem:[%s0 + $0x10] sm:$0xff]
  %v18 = vld [vmem:[%s0 + $0x18] sm:$0xff]
  %v19 = vld [vmem:[%s0 + $0x20] sm:$0xff]
  %v20 = vld [vmem:[%s0 + $0x28] sm:$0xff]
  %v21 = vld [vmem:[%s0 + $0x30] sm:$0xff]
  %v22 = vld [vmem:[%s0 + $0x38] sm:$0xff]
  %v23 = vld [vmem:[%s1] sm:$0xf]
  %v24 = vld [vmem:[%s1 + $0x4] sm:$0xf]
  %v25 = vld [vmem:[%s1 + $0x8] sm:$0xf]
  %v26 = vld [vmem:[%s1 + $0xc] sm:$0xf]
  %v27 = vld [vmem:[%s1 + $0x10] sm:$0xf]
  %v28 = vld [vmem:[%s1 + $0x14] sm:$0xf]
  %v29 = vld [vmem:[%s1 + $0x18] sm:$0xf]
  %v30 = vld [vmem:[%s1 + $0x1c] sm:$0xf]
  %v31 = vld [vmem:[%s1 + $0x20] sm:$0xf]
  %v32 = vld [vmem:[%s1 + $0x24] sm:$0xf]
  %v33 = vld [vmem:[%s1 + $0x28] sm:$0xf]
  %v34 = vld [vmem:[%s1 + $0x2c] sm:$0xf]
  %v35 = vld [vmem:[%s1 + $0x30] sm:$0xf]
  %v36 = vld [vmem:[%s1 + $0x34] sm:$0xf]
  %v37 = vld [vmem:[%s1 + $0x38] sm:$0xf]
  %v38 = vld [vmem:[%s1 + $0x3c] sm:$0xf]
  %v39 = vld [vmem:[%s1 + $0x40] sm:$0xf]
  %v40 = vld [vmem:[%s1 + $0x44] sm:$0xf]
  %v41 = vld [vmem:[%s1 + $0x48] sm:$0xf]
  %v42 = vld [vmem:[%s1 + $0x4c] sm:$0xf]
  %v43 = vld [vmem:[%s1 + $0x50] sm:$0xf]
  %v44 = vld [vmem:[%s1 + $0x54] sm:$0xf]
  %v45 = vld [vmem:[%s1 + $0x58] sm:$0xf]
  %v46 = vld [vmem:[%s1 + $0x5c] sm:$0xf]
  %v47 = vld [vmem:[%s1 + $0x60] sm:$0xf]
  %v48 = vld [vmem:[%s1 + $0x64] sm:$0xf]
  %v49 = vld [vmem:[%s1 + $0x68] sm:$0xf]
  %v50 = vld [vmem:[%s1 + $0x6c] sm:$0xf]
  %v51 = vld [vmem:[%s1 + $0x70] sm:$0xf]
  %v52 = vld [vmem:[%s1 + $0x74] sm:$0xf]
  %v53 = vld [vmem:[%s1 + $0x78] sm:$0xf]
  %v54 = vld [vmem:[%s1 + $0x7c] sm:$0xf]
  %v55 = vld [vmem:[%s1 + $0x80] sm:$0xf]
  %v56 = vld [vmem:[%s1 + $0x84] sm:$0xf]
  %v57 = vld [vmem:[%s1 + $0x88] sm:$0xf]
  %v58 = vld [vmem:[%s1 + $0x8c] sm:$0xf]
  %v59 = vld [vmem:[%s1 + $0x90] sm:$0xf]
  %v60 = vld [vmem:[%s1 + $0x94] sm:$0xf]
  %v61 = vld [vmem:[%s1 + $0x98] sm:$0xf]
  %v62 = vld [vmem:[%s1 + $0x9c] sm:$0xf]
  %v63 = vld [vmem:[%s1 + $0xa0] sm:$0xf]
  %v64 = vld [vmem:[%s1 + $0xa4] sm:$0xf]
  %v65 = vld [vmem:[%s1 + $0xa8] sm:$0xf]
  %v66 = vld [vmem:[%s1 + $0xac] sm:$0xf]
  %v67 = vld [vmem:[%s1 + $0xb0] sm:$0xf]
  %v68 = vld [vmem:[%s1 + $0xb4] sm:$0xf]
  %v69 = vld [vmem:[%s1 + $0xb8] sm:$0xf]
  %v70 = vld [vmem:[%s1 + $0xbc] sm:$0xf]
  %v71 = vld [vmem:[%s1 + $0xc0] sm:$0xf]
  %v72 = vld [vmem:[%s1 + $0xc4] sm:$0xf]
  %v73 = vld [vmem:[%s1 + $0xc8] sm:$0xf]
  %v74 = vld [vmem:[%s1 + $0xcc] sm:$0xf]
  %v75 = vld [vmem:[%s1 + $0xd0] sm:$0xf]
  %v76 = vld [vmem:[%s1 + $0xd4] sm:$0xf]
  %v77 = vld [vmem:[%s1 + $0xd8] sm:$0xf]
  %v78 = vld [vmem:[%s1 + $0xdc] sm:$0xf]
  %v79 = vld [vmem:[%s1 + $0xe0] sm:$0xf]
  %v80 = vld [vmem:[%s1 + $0xe4] sm:$0xf]
  %v81 = vld [vmem:[%s1 + $0xe8] sm:$0xf]
  %v82 = vld [vmem:[%s1 + $0xec] sm:$0xf]
  %v83 = vld [vmem:[%s1 + $0xf0] sm:$0xf]
  %v84 = vld [vmem:[%s1 + $0xf4] sm:$0xf]
  %v85 = vld [vmem:[%s1 + $0xf8] sm:$0xf]
  %v86 = vld [vmem:[%s1 + $0xfc] sm:$0xf]
  %v87 = vld [vmem:[%s2] sm:$0x1]
  %v89 = vlaneseq
  %v90 = vshrl.u32 %v89, 7
  %v91 = vsub.s32 0, %v90
  %v92 = vrot.slane %v87, %v91
  %v102 = vunpack.c.l.b16 %v15
  %v103 = vunpack.c.h.b16 %v15
  %v104 = vunpack.c.l.b16 %v16
  %v105 = vunpack.c.h.b16 %v16
  %v106 = vunpack.c.l.b16 %v17
  %v107 = vunpack.c.h.b16 %v17
  %v108 = vunpack.c.l.b16 %v18
  %v109 = vunpack.c.h.b16 %v18
  %v110 = vunpack.c.l.b16 %v19
  %v111 = vunpack.c.h.b16 %v19
  %v112 = vunpack.c.l.b16 %v20
  %v113 = vunpack.c.h.b16 %v20
  %v114 = vunpack.c.l.b16 %v21
  %v115 = vunpack.c.h.b16 %v21
  %v116 = vunpack.c.l.b16 %v22
  %v117 = vunpack.c.h.b16 %v22
  %v118 = vpack.c.b16 %v106, %v102
  %v119 = vpack.c.b16 %v107, %v103
  %v120 = vpack.c.b16 %v108, %v104
  %v121 = vpack.c.b16 %v109, %v105
  %v122 = vpack.c.b16 %v114, %v110
  %v123 = vpack.c.b16 %v115, %v111
  %v124 = vpack.c.b16 %v116, %v112
  %v125 = vpack.c.b16 %v117, %v113
  %v198 = vunpack.c.l.b16 %v23
  %v199 = vunpack.c.l.b16 %v24
  %v200 = vunpack.c.l.b16 %v25
  %v201 = vunpack.c.l.b16 %v26
  %v202 = vunpack.c.l.b16 %v27
  %v203 = vunpack.c.l.b16 %v28
  %v204 = vunpack.c.l.b16 %v29
  %v205 = vunpack.c.l.b16 %v30
  %v206 = vunpack.c.l.b16 %v31
  %v207 = vunpack.c.l.b16 %v32
  %v208 = vunpack.c.l.b16 %v33
  %v209 = vunpack.c.l.b16 %v34
  %v210 = vunpack.c.l.b16 %v35
  %v211 = vunpack.c.l.b16 %v36
  %v212 = vunpack.c.l.b16 %v37
  %v213 = vunpack.c.l.b16 %v38
  %v214 = vunpack.c.l.b16 %v39
  %v215 = vunpack.c.l.b16 %v40
  %v216 = vunpack.c.l.b16 %v41
  %v217 = vunpack.c.l.b16 %v42
  %v218 = vunpack.c.l.b16 %v43
  %v219 = vunpack.c.l.b16 %v44
  %v220 = vunpack.c.l.b16 %v45
  %v221 = vunpack.c.l.b16 %v46
  %v222 = vunpack.c.l.b16 %v47
  %v223 = vunpack.c.l.b16 %v48
  %v224 = vunpack.c.l.b16 %v49
  %v225 = vunpack.c.l.b16 %v50
  %v226 = vunpack.c.l.b16 %v51
  %v227 = vunpack.c.l.b16 %v52
  %v228 = vunpack.c.l.b16 %v53
  %v229 = vunpack.c.l.b16 %v54
  %v230 = vunpack.c.l.b16 %v55
  %v231 = vunpack.c.l.b16 %v56
  %v232 = vunpack.c.l.b16 %v57
  %v233 = vunpack.c.l.b16 %v58
  %v234 = vunpack.c.l.b16 %v59
  %v235 = vunpack.c.l.b16 %v60
  %v236 = vunpack.c.l.b16 %v61
  %v237 = vunpack.c.l.b16 %v62
  %v238 = vunpack.c.l.b16 %v63
  %v239 = vunpack.c.l.b16 %v64
  %v240 = vunpack.c.l.b16 %v65
  %v241 = vunpack.c.l.b16 %v66
  %v242 = vunpack.c.l.b16 %v67
  %v243 = vunpack.c.l.b16 %v68
  %v244 = vunpack.c.l.b16 %v69
  %v245 = vunpack.c.l.b16 %v70
  %v246 = vunpack.c.l.b16 %v71
  %v247 = vunpack.c.l.b16 %v72
  %v248 = vunpack.c.l.b16 %v73
  %v249 = vunpack.c.l.b16 %v74
  %v250 = vunpack.c.l.b16 %v75
  %v251 = vunpack.c.l.b16 %v76
  %v252 = vunpack.c.l.b16 %v77
  %v253 = vunpack.c.l.b16 %v78
  %v254 = vunpack.c.l.b16 %v79
  %v255 = vunpack.c.l.b16 %v80
  %v256 = vunpack.c.l.b16 %v81
  %v257 = vunpack.c.l.b16 %v82
  %v258 = vunpack.c.l.b16 %v83
  %v259 = vunpack.c.l.b16 %v84
  %v260 = vunpack.c.l.b16 %v85
  %v261 = vunpack.c.l.b16 %v86
  %v262 = vpack.c.b16 %v199, %v198
  %v263 = vpack.c.b16 %v201, %v200
  %v264 = vpack.c.b16 %v203, %v202
  %v265 = vpack.c.b16 %v205, %v204
  %v266 = vpack.c.b16 %v207, %v206
  %v267 = vpack.c.b16 %v209, %v208
  %v268 = vpack.c.b16 %v211, %v210
  %v269 = vpack.c.b16 %v213, %v212
  %v270 = vpack.c.b16 %v215, %v214
  %v271 = vpack.c.b16 %v217, %v216
  %v272 = vpack.c.b16 %v219, %v218
  %v273 = vpack.c.b16 %v221, %v220
  %v274 = vpack.c.b16 %v223, %v222
  %v275 = vpack.c.b16 %v225, %v224
  %v276 = vpack.c.b16 %v227, %v226
  %v277 = vpack.c.b16 %v229, %v228
  %v278 = vpack.c.b16 %v231, %v230
  %v279 = vpack.c.b16 %v233, %v232
  %v280 = vpack.c.b16 %v235, %v234
  %v281 = vpack.c.b16 %v237, %v236
  %v282 = vpack.c.b16 %v239, %v238
  %v283 = vpack.c.b16 %v241, %v240
  %v284 = vpack.c.b16 %v243, %v242
  %v285 = vpack.c.b16 %v245, %v244
  %v286 = vpack.c.b16 %v247, %v246
  %v287 = vpack.c.b16 %v249, %v248
  %v288 = vpack.c.b16 %v251, %v250
  %v289 = vpack.c.b16 %v253, %v252
  %v290 = vpack.c.b16 %v255, %v254
  %v291 = vpack.c.b16 %v257, %v256
  %v292 = vpack.c.b16 %v259, %v258
  %v293 = vpack.c.b16 %v261, %v260
  %326 = vmatprep.subr.bf16.mxu0 0
  %327 = vmatpush1.bf16.msra.mxu0 %v269
  %328 = vmatprep.subr.bf16.mxu0 0
  %329 = vmatpush1.bf16.msra.mxu0 %v268
  %330 = vmatprep.subr.bf16.mxu0 0
  %331 = vmatpush1.bf16.msra.mxu0 %v267
  %332 = vmatprep.subr.bf16.mxu0 0
  %333 = vmatpush1.bf16.msra.mxu0 %v266
  %334 = vmatprep.subr.bf16.mxu0 0
  %335 = vmatpush1.bf16.msra.mxu0 %v265
  %336 = vmatprep.subr.bf16.mxu0 0
  %337 = vmatpush1.bf16.msra.mxu0 %v264
  %338 = vmatprep.subr.bf16.mxu0 0
  %339 = vmatpush1.bf16.msra.mxu0 %v263
  %340 = vmatprep.subr.bf16.mxu0 0
  %341 = vmatpush1.bf16.msra.mxu0 %v262
  %342 = vmatprep.subr.bf16.mxu0 0
  %343 = vmatpush2.bf16.msra.mxu0 %v277
  %344 = vmatprep.subr.bf16.mxu0 0
  %345 = vmatpush2.bf16.msra.mxu0 %v276
  %346 = vmatprep.subr.bf16.mxu0 0
  %347 = vmatpush2.bf16.msra.mxu0 %v275
  %348 = vmatprep.subr.bf16.mxu0 0
  %349 = vmatpush2.bf16.msra.mxu0 %v274
  %350 = vmatprep.subr.bf16.mxu0 0
  %351 = vmatpush2.bf16.msra.mxu0 %v273
  %352 = vmatprep.subr.bf16.mxu0 0
  %353 = vmatpush2.bf16.msra.mxu0 %v272
  %354 = vmatprep.subr.bf16.mxu0 0
  %355 = vmatpush2.bf16.msra.mxu0 %v271
  %356 = vmatprep.subr.bf16.mxu0 0
  %357 = vmatpush2.bf16.msra.mxu0 %v270
  %358 = vmatprep.mubr.bf16.mxu0 %v119
  %359 = vmatmul.mubr.bf16.gmra.mxu0 %v118
  %v360 = vpop.f32.mrf.mxu0
  %v361 = vadd.f32 %v92, %v360
  %v362 = vpop.f32.mrf.mxu0
  %v363 = vpop.f32.mrf.mxu0
  %v364 = vadd.f32 %v92, %v363
  %v365 = vpop.f32.mrf.mxu0
  %366 = vmatprep.mubr.bf16.mxu0 %v123
  %367 = vmatmul.mubr.bf16.gmra.mxu0 %v122
  %v368 = vpop.f32.mrf.mxu0
  %v369 = vadd.f32 %v92, %v368
  %v370 = vpop.f32.mrf.mxu0
  %v371 = vpop.f32.mrf.mxu0
  %v372 = vadd.f32 %v92, %v371
  %v373 = vpop.f32.mrf.mxu0
  %374 = vdwg.mxu0
  %375 = vmatprep.subr.bf16.mxu0 0
  %376 = vmatpush1.bf16.msra.mxu0 %v285
  %377 = vmatprep.subr.bf16.mxu0 0
  %378 = vmatpush1.bf16.msra.mxu0 %v284
  %379 = vmatprep.subr.bf16.mxu0 0
  %380 = vmatpush1.bf16.msra.mxu0 %v283
  %381 = vmatprep.subr.bf16.mxu0 0
  %382 = vmatpush1.bf16.msra.mxu0 %v282
  %383 = vmatprep.subr.bf16.mxu0 0
  %384 = vmatpush1.bf16.msra.mxu0 %v281
  %385 = vmatprep.subr.bf16.mxu0 0
  %386 = vmatpush1.bf16.msra.mxu0 %v280
  %387 = vmatprep.subr.bf16.mxu0 0
  %388 = vmatpush1.bf16.msra.mxu0 %v279
  %389 = vmatprep.subr.bf16.mxu0 0
  %390 = vmatpush1.bf16.msra.mxu0 %v278
  %391 = vmatprep.subr.bf16.mxu0 0
  %392 = vmatpush2.bf16.msra.mxu0 %v293
  %393 = vmatprep.subr.bf16.mxu0 0
  %394 = vmatpush2.bf16.msra.mxu0 %v292
  %395 = vmatprep.subr.bf16.mxu0 0
  %396 = vmatpush2.bf16.msra.mxu0 %v291
  %397 = vmatprep.subr.bf16.mxu0 0
  %398 = vmatpush2.bf16.msra.mxu0 %v290
  %399 = vmatprep.subr.bf16.mxu0 0
  %400 = vmatpush2.bf16.msra.mxu0 %v289
  %401 = vmatprep.subr.bf16.mxu0 0
  %402 = vmatpush2.bf16.msra.mxu0 %v288
  %403 = vmatprep.subr.bf16.mxu0 0
  %404 = vmatpush2.bf16.msra.mxu0 %v287
  %405 = vmatprep.subr.bf16.mxu0 0
  %406 = vmatpush2.bf16.msra.mxu0 %v286
  %407 = vmatprep.mubr.bf16.mxu0 %v121
  %408 = vmatmul.mubr.bf16.gmra.mxu0 %v120
  %v409 = vpop.f32.mrf.mxu0
  %v410 = vadd.f32 %v361, %v409
  %v411 = vpop.f32.mrf.mxu0
  %v412 = vpop.f32.mrf.mxu0
  %v413 = vadd.f32 %v364, %v412
  %v414 = vpop.f32.mrf.mxu0
  %415 = vmatprep.mubr.bf16.mxu0 %v125
  %416 = vmatmul.mubr.bf16.gmra.mxu0 %v124
  %v417 = vpop.f32.mrf.mxu0
  %v418 = vadd.f32 %v369, %v417
  %v419 = vpop.f32.mrf.mxu0
  %v420 = vpop.f32.mrf.mxu0
  %v421 = vadd.f32 %v372, %v420
  %v422 = vpop.f32.mrf.mxu0
  %423 = vdwg.mxu0
  %vm424 = vcmp.ge.f32.partialorder %v410, 0.0
  %vm425 = vcmp.ge.f32.partialorder %v413, 0.0
  %vm426 = vcmp.ge.f32.partialorder %v418, 0.0
  %vm427 = vcmp.ge.f32.partialorder %v421, 0.0
  %v428 = vmul.f32 %v410, 0.2
  %v429 = vmul.f32 %v413, 0.2
  %v430 = vmul.f32 %v418, 0.2
  %v431 = vmul.f32 %v421, 0.2
  %v432 = vsel %vm424, %v410, %v428
  %v433 = vsel %vm425, %v413, %v429
  %v434 = vsel %vm426, %v418, %v430
  %v435 = vsel %vm427, %v421, %v431
  %v436 = vpack.c.bf16 %v433, %v432
  %v437 = vpack.c.bf16 %v435, %v434
  %v440 = vunpack.c.l.b16 %v436
  %v441 = vunpack.c.h.b16 %v436
  %v442 = vunpack.c.l.b16 %v437
  %v443 = vunpack.c.h.b16 %v437
  %v444 = vpack.c.b16 %v440, %v440
  %v445 = vpack.c.b16 %v441, %v441
  %v446 = vpack.c.b16 %v442, %v442
  %v447 = vpack.c.b16 %v443, %v443
  %452 = vst [vmem:[%s3] sm:$0xf] %v444
  %453 = vst [vmem:[%s3 + $0x4] sm:$0xf] %v445
  %454 = vst [vmem:[%s3 + $0x8] sm:$0xf] %v446
  %455 = vst [vmem:[%s3 + $0xc] sm:$0xf] %v447
  // Predicated region
  $region14: #{discriminator_forward.3} parent=0 // pred_check
    _
  $region15: #{discriminator_forward.3} parent=0 // pred_check_branch
    %457 = sbr.rel (0) target = $region17
  $region16: #{discriminator_forward.3} parent=0 // pred_region
    _
  $region17: #{discriminator_forward.3} parent=0 // pred_fallthru
    _
  // Predicated region
  $region18: #{discriminator_forward.3} parent=0 // pred_check
    _
  $region19: #{discriminator_forward.3} parent=0 // pred_check_branch
    %459 = sbr.rel (0) target = $region21
  $region20: #{discriminator_forward.3} parent=0 // pred_region
    _
  $region21: #{discriminator_forward.3} parent=0 // pred_fallthru
    _

// kernel: tile.47
$region0: #{tile.47}
  #allocation0 [shape = 's32[1]{0}', space=sflag, size = 0x4, scoped, tag = 'scoped memory for tile.47']
  %s0 = inlined_call_operand.vmem [shape: f32[16], index: 0, kind: input, shape index: {}]
  %s1 = inlined_call_operand.vmem [shape: f32[8,16], index: 1, kind: output, shape index: {}]
  // Predicated region
  $region2: #{tile.47} parent=0 // pred_check
    _
  $region3: #{tile.47} parent=0 // pred_check_branch
    %3 = sbr.rel (0) target = $region5
  $region4: #{tile.47} parent=0 // pred_region
    _
  $region5: #{tile.47} parent=0 // pred_fallthru
    _
  %v4 = vld [vmem:[%s0] ss:$0 sm:$0xff]
  %5 = vst [vmem:[%s1] sm:$0xff] %v4

// kernel: tile.48
$region0: #{tile.48}
  %s0 = inlined_call_operand.vmem [shape: f32[8,16], index: 0, kind: input, shape index: {}]
  %s1 = inlined_call_operand.vmem [shape: f32[1,128], index: 1, kind: output, shape index: {}]
  $region1: #{tile.48} parent=0
    #allocation0 [shape = 'u8[4096]{0}', space=vmem, size = 0x1000, scoped, tag = 'scoped mem for output reshape']
    %v2 = vld [vmem:[%s0] sm:$0x1]
    %vm3 = vcmask 130048
    %4 = vst.msk [vmem:[#allocation0] sm:$0x1] %vm3, %v2
    %s5 = scalar_lea.vmem %s0, 7
    %v6 = vld [vmem:[%s5] sm:$0x1]
    %7 = vrot.lane.b32.xlu0 %v6, 112
    %v8 = vpop.permute.xlu0 %7
    %vm9 = vcmask 1048448
    %10 = vst.msk [vmem:[#allocation0] sm:$0x1] %vm9, %v8
    %s11 = scalar_lea.vmem %s0, 6
    %v12 = vld [vmem:[%s11] sm:$0x1]
    %13 = vrot.lane.b32.xlu0 %v12, 96
    %v14 = vpop.permute.xlu0 %13
    %vm15 = vcmask 917248
    %16 = vst.msk [vmem:[#allocation0] sm:$0x1] %vm15, %v14
    %s17 = scalar_lea.vmem %s0, 5
    %v18 = vld [vmem:[%s17] sm:$0x1]
    %19 = vrot.lane.b32.xlu0 %v18, 80
    %v20 = vpop.permute.xlu0 %19
    %vm21 = vcmask 786048
    %22 = vst.msk [vmem:[#allocation0] sm:$0x1] %vm21, %v20
    %s23 = scalar_lea.vmem %s0, 4
    %v24 = vld [vmem:[%s23] sm:$0x1]
    %25 = vrot.lane.b32.xlu0 %v24, 64
    %v26 = vpop.permute.xlu0 %25
    %vm27 = vcmask 654848
    %28 = vst.msk [vmem:[#allocation0] sm:$0x1] %vm27, %v26
    %s29 = scalar_lea.vmem %s0, 3
    %v30 = vld [vmem:[%s29] sm:$0x1]
    %31 = vrot.lane.b32.xlu0 %v30, 48
    %v32 = vpop.permute.xlu0 %31
    %vm33 = vcmask 523648
    %34 = vst.msk [vmem:[#allocation0] sm:$0x1] %vm33, %v32
    %s35 = scalar_lea.vmem %s0, 2
    %v36 = vld [vmem:[%s35] sm:$0x1]
    %37 = vrot.lane.b32.xlu0 %v36, 32
    %v38 = vpop.permute.xlu0 %37
    %vm39 = vcmask 392448
    %40 = vst.msk [vmem:[#allocation0] sm:$0x1] %vm39, %v38
    %s41 = scalar_lea.vmem %s0, 1
    %v42 = vld [vmem:[%s41] sm:$0x1]
    %43 = vrot.lane.b32.xlu0 %v42, 16
    %v44 = vpop.permute.xlu0 %43
    %vm45 = vcmask 261248
    %46 = vst.msk [vmem:[#allocation0] sm:$0x1] %vm45, %v44
    %s48 = sshll.u32 1, 1
    %s49 = ssub.s32 %s48, 1
    %v51 = vld [vmem:[#allocation0] sm:%s49]
    %s52 = sshll.u32 1, 1
    %s53 = ssub.s32 %s52, 1
    %54 = vst [vmem:[%s1] sm:%s53] %v51

// kernel: discriminator_forward.4
$region0: #{discriminator_forward.4}
  #allocation0 [shape = 'u32[]', space=smem, size = 0x4, offset = 0x4, fixed_abs, tag = 'smem constant byte address 0x4 - core index']
  #allocation1 [shape = 'u32[144,128]{1,0:T(1,128)}', space=vmem, size = 0x12000, scoped, tag = 'internal scratch']
  %s0 = inlined_call_operand.vmem [shape: bf16[16,1024], index: 0, kind: input, shape index: {}]
  %s1 = inlined_call_operand.vmem [shape: bf16[1024,128], index: 1, kind: input, shape index: {}]
  %s2 = inlined_call_operand.vmem [shape: f32[1,128], index: 2, kind: input, shape index: {}]
  %s3 = inlined_call_operand.vmem [shape: f32[1,128], index: 3, kind: input, shape index: {}]
  %s4 = inlined_call_operand.vmem [shape: f32[1,128], index: 4, kind: input, shape index: {}]
  %s5 = inlined_call_operand.vmem [shape: bf16[16,128], index: 5, kind: output, shape index: {}]
  %s6 = sld [smem:[#allocation0]]
  $region30: #{discriminator_forward.4} parent=0
    _
  %s8 = ssub.s32 1, %s6
  %s9 = scalar_select 0, %s8, %s6
  // Predicated region
  $region2: #{discriminator_forward.4} parent=0 // pred_check
    _
  $region3: #{discriminator_forward.4} parent=0 // pred_check_branch
    %11 = sbr.rel (0) target = $region5
  $region4: #{discriminator_forward.4} parent=0 // pred_region
    _
  $region5: #{discriminator_forward.4} parent=0 // pred_fallthru
    _
  // Predicated region
  $region6: #{discriminator_forward.4} parent=0 // pred_check
    _
  $region7: #{discriminator_forward.4} parent=0 // pred_check_branch
    %13 = sbr.rel (0) target = $region9
  $region8: #{discriminator_forward.4} parent=0 // pred_region
    _
  $region9: #{discriminator_forward.4} parent=0 // pred_fallthru
    _
  // Predicated region
  $region10: #{discriminator_forward.4} parent=0 // pred_check
    _
  $region11: #{discriminator_forward.4} parent=0 // pred_check_branch
    %15 = sbr.rel (0) target = $region13
  $region12: #{discriminator_forward.4} parent=0 // pred_region
    _
  $region13: #{discriminator_forward.4} parent=0 // pred_fallthru
    _
  // Predicated region
  $region14: #{discriminator_forward.4} parent=0 // pred_check
    _
  $region15: #{discriminator_forward.4} parent=0 // pred_check_branch
    %17 = sbr.rel (0) target = $region17
  $region16: #{discriminator_forward.4} parent=0 // pred_region
    _
  $region17: #{discriminator_forward.4} parent=0 // pred_fallthru
    _
  // Predicated region
  $region18: #{discriminator_forward.4} parent=0 // pred_check
    _
  $region19: #{discriminator_forward.4} parent=0 // pred_check_branch
    %19 = sbr.rel (0) target = $region21
  $region20: #{discriminator_forward.4} parent=0 // pred_region
    _
  $region21: #{discriminator_forward.4} parent=0 // pred_fallthru
    _
  %v21 = vld [vmem:[%s0] sm:$0xff]
  %v22 = vld [vmem:[%s0 + $0x8] sm:$0xff]
  %v23 = vld [vmem:[%s0 + $0x10] sm:$0xff]
  %v24 = vld [vmem:[%s0 + $0x18] sm:$0xff]
  %v25 = vld [vmem:[%s0 + $0x20] sm:$0xff]
  %v26 = vld [vmem:[%s0 + $0x28] sm:$0xff]
  %v27 = vld [vmem:[%s0 + $0x30] sm:$0xff]
  %v28 = vld [vmem:[%s0 + $0x38] sm:$0xff]
  %v29 = vld [vmem:[%s1] sm:$0xf]
  %v30 = vld [vmem:[%s1 + $0x4] sm:$0xf]
  %v31 = vld [vmem:[%s1 + $0x8] sm:$0xf]
  %v32 = vld [vmem:[%s1 + $0xc] sm:$0xf]
  %v33 = vld [vmem:[%s1 + $0x10] sm:$0xf]
  %v34 = vld [vmem:[%s1 + $0x14] sm:$0xf]
  %v35 = vld [vmem:[%s1 + $0x18] sm:$0xf]
  %v36 = vld [vmem:[%s1 + $0x1c] sm:$0xf]
  %v37 = vld [vmem:[%s1 + $0x20] sm:$0xf]
  %v38 = vld [vmem:[%s1 + $0x24] sm:$0xf]
  %v39 = vld [vmem:[%s1 + $0x28] sm:$0xf]
  %v40 = vld [vmem:[%s1 + $0x2c] sm:$0xf]
  %v41 = vld [vmem:[%s1 + $0x30] sm:$0xf]
  %v42 = vld [vmem:[%s1 + $0x34] sm:$0xf]
  %v43 = vld [vmem:[%s1 + $0x38] sm:$0xf]
  %v44 = vld [vmem:[%s1 + $0x3c] sm:$0xf]
  %v45 = vld [vmem:[%s1 + $0x40] sm:$0xf]
  %v46 = vld [vmem:[%s1 + $0x44] sm:$0xf]
  %v47 = vld [vmem:[%s1 + $0x48] sm:$0xf]
  %v48 = vld [vmem:[%s1 + $0x4c] sm:$0xf]
  %v49 = vld [vmem:[%s1 + $0x50] sm:$0xf]
  %v50 = vld [vmem:[%s1 + $0x54] sm:$0xf]
  %v51 = vld [vmem:[%s1 + $0x58] sm:$0xf]
  %v52 = vld [vmem:[%s1 + $0x5c] sm:$0xf]
  %v53 = vld [vmem:[%s1 + $0x60] sm:$0xf]
  %v54 = vld [vmem:[%s1 + $0x64] sm:$0xf]
  %v55 = vld [vmem:[%s1 + $0x68] sm:$0xf]
  %v56 = vld [vmem:[%s1 + $0x6c] sm:$0xf]
  %v57 = vld [vmem:[%s1 + $0x70] sm:$0xf]
  %v58 = vld [vmem:[%s1 + $0x74] sm:$0xf]
  %v59 = vld [vmem:[%s1 + $0x78] sm:$0xf]
  %v60 = vld [vmem:[%s1 + $0x7c] sm:$0xf]
  %v61 = vld [vmem:[%s1 + $0x80] sm:$0xf]
  %v62 = vld [vmem:[%s1 + $0x84] sm:$0xf]
  %v63 = vld [vmem:[%s1 + $0x88] sm:$0xf]
  %v64 = vld [vmem:[%s1 + $0x8c] sm:$0xf]
  %v65 = vld [vmem:[%s1 + $0x90] sm:$0xf]
  %v66 = vld [vmem:[%s1 + $0x94] sm:$0xf]
  %v67 = vld [vmem:[%s1 + $0x98] sm:$0xf]
  %v68 = vld [vmem:[%s1 + $0x9c] sm:$0xf]
  %v69 = vld [vmem:[%s1 + $0xa0] sm:$0xf]
  %v70 = vld [vmem:[%s1 + $0xa4] sm:$0xf]
  %v71 = vld [vmem:[%s1 + $0xa8] sm:$0xf]
  %v72 = vld [vmem:[%s1 + $0xac] sm:$0xf]
  %v73 = vld [vmem:[%s1 + $0xb0] sm:$0xf]
  %v74 = vld [vmem:[%s1 + $0xb4] sm:$0xf]
  %v75 = vld [vmem:[%s1 + $0xb8] sm:$0xf]
  %v76 = vld [vmem:[%s1 + $0xbc] sm:$0xf]
  %v77 = vld [vmem:[%s1 + $0xc0] sm:$0xf]
  %v78 = vld [vmem:[%s1 + $0xc4] sm:$0xf]
  %v79 = vld [vmem:[%s1 + $0xc8] sm:$0xf]
  %v80 = vld [vmem:[%s1 + $0xcc] sm:$0xf]
  %v81 = vld [vmem:[%s1 + $0xd0] sm:$0xf]
  %v82 = vld [vmem:[%s1 + $0xd4] sm:$0xf]
  %v83 = vld [vmem:[%s1 + $0xd8] sm:$0xf]
  %v84 = vld [vmem:[%s1 + $0xdc] sm:$0xf]
  %v85 = vld [vmem:[%s1 + $0xe0] sm:$0xf]
  %v86 = vld [vmem:[%s1 + $0xe4] sm:$0xf]
  %v87 = vld [vmem:[%s1 + $0xe8] sm:$0xf]
  %v88 = vld [vmem:[%s1 + $0xec] sm:$0xf]
  %v89 = vld [vmem:[%s1 + $0xf0] sm:$0xf]
  %v90 = vld [vmem:[%s1 + $0xf4] sm:$0xf]
  %v91 = vld [vmem:[%s1 + $0xf8] sm:$0xf]
  %v92 = vld [vmem:[%s1 + $0xfc] sm:$0xf]
  %v93 = vld [vmem:[%s1 + $0x100] sm:$0xf]
  %v94 = vld [vmem:[%s1 + $0x104] sm:$0xf]
  %v95 = vld [vmem:[%s1 + $0x108] sm:$0xf]
  %v96 = vld [vmem:[%s1 + $0x10c] sm:$0xf]
  %v97 = vld [vmem:[%s1 + $0x110] sm:$0xf]
  %v98 = vld [vmem:[%s1 + $0x114] sm:$0xf]
  %v99 = vld [vmem:[%s1 + $0x118] sm:$0xf]
  %v100 = vld [vmem:[%s1 + $0x11c] sm:$0xf]
  %v101 = vld [vmem:[%s1 + $0x120] sm:$0xf]
  %v102 = vld [vmem:[%s1 + $0x124] sm:$0xf]
  %v103 = vld [vmem:[%s1 + $0x128] sm:$0xf]
  %v104 = vld [vmem:[%s1 + $0x12c] sm:$0xf]
  %v105 = vld [vmem:[%s1 + $0x130] sm:$0xf]
  %v106 = vld [vmem:[%s1 + $0x134] sm:$0xf]
  %v107 = vld [vmem:[%s1 + $0x138] sm:$0xf]
  %v108 = vld [vmem:[%s1 + $0x13c] sm:$0xf]
  %v109 = vld [vmem:[%s1 + $0x140] sm:$0xf]
  %v110 = vld [vmem:[%s1 + $0x144] sm:$0xf]
  %v111 = vld [vmem:[%s1 + $0x148] sm:$0xf]
  %v112 = vld [vmem:[%s1 + $0x14c] sm:$0xf]
  %v113 = vld [vmem:[%s1 + $0x150] sm:$0xf]
  %v114 = vld [vmem:[%s1 + $0x154] sm:$0xf]
  %v115 = vld [vmem:[%s1 + $0x158] sm:$0xf]
  %v116 = vld [vmem:[%s1 + $0x15c] sm:$0xf]
  %v117 = vld [vmem:[%s1 + $0x160] sm:$0xf]
  %v118 = vld [vmem:[%s1 + $0x164] sm:$0xf]
  %v119 = vld [vmem:[%s1 + $0x168] sm:$0xf]
  %v120 = vld [vmem:[%s1 + $0x16c] sm:$0xf]
  %v121 = vld [vmem:[%s1 + $0x170] sm:$0xf]
  %v122 = vld [vmem:[%s1 + $0x174] sm:$0xf]
  %v123 = vld [vmem:[%s1 + $0x178] sm:$0xf]
  %v124 = vld [vmem:[%s1 + $0x17c] sm:$0xf]
  %v125 = vld [vmem:[%s1 + $0x180] sm:$0xf]
  %v126 = vld [vmem:[%s1 + $0x184] sm:$0xf]
  %v127 = vld [vmem:[%s1 + $0x188] sm:$0xf]
  %v128 = vld [vmem:[%s1 + $0x18c] sm:$0xf]
  %v129 = vld [vmem:[%s1 + $0x190] sm:$0xf]
  %v130 = vld [vmem:[%s1 + $0x194] sm:$0xf]
  %v131 = vld [vmem:[%s1 + $0x198] sm:$0xf]
  %v132 = vld [vmem:[%s1 + $0x19c] sm:$0xf]
  %v133 = vld [vmem:[%s1 + $0x1a0] sm:$0xf]
  %v134 = vld [vmem:[%s1 + $0x1a4] sm:$0xf]
  %v135 = vld [vmem:[%s1 + $0x1a8] sm:$0xf]
  %v136 = vld [vmem:[%s1 + $0x1ac] sm:$0xf]
  %v137 = vld [vmem:[%s1 + $0x1b0] sm:$0xf]
  %v138 = vld [vmem:[%s1 + $0x1b4] sm:$0xf]
  %v139 = vld [vmem:[%s1 + $0x1b8] sm:$0xf]
  %v140 = vld [vmem:[%s1 + $0x1bc] sm:$0xf]
  %v141 = vld [vmem:[%s1 + $0x1c0] sm:$0xf]
  %v142 = vld [vmem:[%s1 + $0x1c4] sm:$0xf]
  %v143 = vld [vmem:[%s1 + $0x1c8] sm:$0xf]
  %v144 = vld [vmem:[%s1 + $0x1cc] sm:$0xf]
  %v145 = vld [vmem:[%s1 + $0x1d0] sm:$0xf]
  %v146 = vld [vmem:[%s1 + $0x1d4] sm:$0xf]
  %v147 = vld [vmem:[%s1 + $0x1d8] sm:$0xf]
  %v148 = vld [vmem:[%s1 + $0x1dc] sm:$0xf]
  %v149 = vld [vmem:[%s1 + $0x1e0] sm:$0xf]
  %v150 = vld [vmem:[%s1 + $0x1e4] sm:$0xf]
  %v151 = vld [vmem:[%s1 + $0x1e8] sm:$0xf]
  %v152 = vld [vmem:[%s1 + $0x1ec] sm:$0xf]
  %v153 = vld [vmem:[%s1 + $0x1f0] sm:$0xf]
  %v154 = vld [vmem:[%s1 + $0x1f4] sm:$0xf]
  %v155 = vld [vmem:[%s1 + $0x1f8] sm:$0xf]
  %v156 = vld [vmem:[%s1 + $0x1fc] sm:$0xf]
  %v157 = vld [vmem:[%s2] sm:$0x1]
  %v159 = vlaneseq
  %v160 = vshrl.u32 %v159, 7
  %v161 = vsub.s32 0, %v160
  %v162 = vrot.slane %v157, %v161
  %v172 = vunpack.c.l.b16 %v21
  %v173 = vunpack.c.h.b16 %v21
  %v174 = vunpack.c.l.b16 %v22
  %v175 = vunpack.c.h.b16 %v22
  %v176 = vunpack.c.l.b16 %v23
  %v177 = vunpack.c.h.b16 %v23
  %v178 = vunpack.c.l.b16 %v24
  %v179 = vunpack.c.h.b16 %v24
  %v180 = vunpack.c.l.b16 %v25
  %v181 = vunpack.c.h.b16 %v25
  %v182 = vunpack.c.l.b16 %v26
  %v183 = vunpack.c.h.b16 %v26
  %v184 = vunpack.c.l.b16 %v27
  %v185 = vunpack.c.h.b16 %v27
  %v186 = vunpack.c.l.b16 %v28
  %v187 = vunpack.c.h.b16 %v28
  %v188 = vpack.c.b16 %v180, %v172
  %v189 = vpack.c.b16 %v181, %v173
  %v190 = vpack.c.b16 %v182, %v174
  %v191 = vpack.c.b16 %v183, %v175
  %v192 = vpack.c.b16 %v184, %v176
  %v193 = vpack.c.b16 %v185, %v177
  %v194 = vpack.c.b16 %v186, %v178
  %v195 = vpack.c.b16 %v187, %v179
  %v332 = vunpack.c.l.b16 %v29
  %v333 = vunpack.c.l.b16 %v30
  %v334 = vunpack.c.l.b16 %v31
  %v335 = vunpack.c.l.b16 %v32
  %v336 = vunpack.c.l.b16 %v33
  %v337 = vunpack.c.l.b16 %v34
  %v338 = vunpack.c.l.b16 %v35
  %v339 = vunpack.c.l.b16 %v36
  %v340 = vunpack.c.l.b16 %v37
  %v341 = vunpack.c.l.b16 %v38
  %v342 = vunpack.c.l.b16 %v39
  %v343 = vunpack.c.l.b16 %v40
  %v344 = vunpack.c.l.b16 %v41
  %v345 = vunpack.c.l.b16 %v42
  %v346 = vunpack.c.l.b16 %v43
  %v347 = vunpack.c.l.b16 %v44
  %v348 = vunpack.c.l.b16 %v45
  %v349 = vunpack.c.l.b16 %v46
  %v350 = vunpack.c.l.b16 %v47
  %v351 = vunpack.c.l.b16 %v48
  %v352 = vunpack.c.l.b16 %v49
  %v353 = vunpack.c.l.b16 %v50
  %v354 = vunpack.c.l.b16 %v51
  %v355 = vunpack.c.l.b16 %v52
  %v356 = vunpack.c.l.b16 %v53
  %v357 = vunpack.c.l.b16 %v54
  %v358 = vunpack.c.l.b16 %v55
  %v359 = vunpack.c.l.b16 %v56
  %v360 = vunpack.c.l.b16 %v57
  %v361 = vunpack.c.l.b16 %v58
  %v362 = vunpack.c.l.b16 %v59
  %v363 = vunpack.c.l.b16 %v60
  %v364 = vunpack.c.l.b16 %v61
  %v365 = vunpack.c.l.b16 %v62
  %v366 = vunpack.c.l.b16 %v63
  %v367 = vunpack.c.l.b16 %v64
  %v368 = vunpack.c.l.b16 %v65
  %v369 = vunpack.c.l.b16 %v66
  %v370 = vunpack.c.l.b16 %v67
  %v371 = vunpack.c.l.b16 %v68
  %v372 = vunpack.c.l.b16 %v69
  %v373 = vunpack.c.l.b16 %v70
  %v374 = vunpack.c.l.b16 %v71
  %v375 = vunpack.c.l.b16 %v72
  %v376 = vunpack.c.l.b16 %v73
  %v377 = vunpack.c.l.b16 %v74
  %v378 = vunpack.c.l.b16 %v75
  %v379 = vunpack.c.l.b16 %v76
  %v380 = vunpack.c.l.b16 %v77
  %v381 = vunpack.c.l.b16 %v78
  %v382 = vunpack.c.l.b16 %v79
  %v383 = vunpack.c.l.b16 %v80
  %v384 = vunpack.c.l.b16 %v81
  %v385 = vunpack.c.l.b16 %v82
  %v386 = vunpack.c.l.b16 %v83
  %v387 = vunpack.c.l.b16 %v84
  %v388 = vunpack.c.l.b16 %v85
  %v389 = vunpack.c.l.b16 %v86
  %v390 = vunpack.c.l.b16 %v87
  %v391 = vunpack.c.l.b16 %v88
  %v392 = vunpack.c.l.b16 %v89
  %v393 = vunpack.c.l.b16 %v90
  %v394 = vunpack.c.l.b16 %v91
  %v395 = vunpack.c.l.b16 %v92
  %v396 = vunpack.c.l.b16 %v93
  %v397 = vunpack.c.l.b16 %v94
  %v398 = vunpack.c.l.b16 %v95
  %v399 = vunpack.c.l.b16 %v96
  %v400 = vunpack.c.l.b16 %v97
  %v401 = vunpack.c.l.b16 %v98
  %v402 = vunpack.c.l.b16 %v99
  %v403 = vunpack.c.l.b16 %v100
  %v404 = vunpack.c.l.b16 %v101
  %v405 = vunpack.c.l.b16 %v102
  %v406 = vunpack.c.l.b16 %v103
  %v407 = vunpack.c.l.b16 %v104
  %v408 = vunpack.c.l.b16 %v105
  %v409 = vunpack.c.l.b16 %v106
  %v410 = vunpack.c.l.b16 %v107
  %v411 = vunpack.c.l.b16 %v108
  %v412 = vunpack.c.l.b16 %v109
  %v413 = vunpack.c.l.b16 %v110
  %v414 = vunpack.c.l.b16 %v111
  %v415 = vunpack.c.l.b16 %v112
  %v416 = vunpack.c.l.b16 %v113
  %v417 = vunpack.c.l.b16 %v114
  %v418 = vunpack.c.l.b16 %v115
  %v419 = vunpack.c.l.b16 %v116
  %v420 = vunpack.c.l.b16 %v117
  %v421 = vunpack.c.l.b16 %v118
  %v422 = vunpack.c.l.b16 %v119
  %v423 = vunpack.c.l.b16 %v120
  %v424 = vunpack.c.l.b16 %v121
  %v425 = vunpack.c.l.b16 %v122
  %v426 = vunpack.c.l.b16 %v123
  %v427 = vunpack.c.l.b16 %v124
  %v428 = vunpack.c.l.b16 %v125
  %v429 = vunpack.c.l.b16 %v126
  %v430 = vunpack.c.l.b16 %v127
  %v431 = vunpack.c.l.b16 %v128
  %v432 = vunpack.c.l.b16 %v129
  %v433 = vunpack.c.l.b16 %v130
  %v434 = vunpack.c.l.b16 %v131
  %v435 = vunpack.c.l.b16 %v132
  %v436 = vunpack.c.l.b16 %v133
  %v437 = vunpack.c.l.b16 %v134
  %v438 = vunpack.c.l.b16 %v135
  %v439 = vunpack.c.l.b16 %v136
  %v440 = vunpack.c.l.b16 %v137
  %v441 = vunpack.c.l.b16 %v138
  %v442 = vunpack.c.l.b16 %v139
  %v443 = vunpack.c.l.b16 %v140
  %v444 = vunpack.c.l.b16 %v141
  %v445 = vunpack.c.l.b16 %v142
  %v446 = vunpack.c.l.b16 %v143
  %v447 = vunpack.c.l.b16 %v144
  %v448 = vunpack.c.l.b16 %v145
  %v449 = vunpack.c.l.b16 %v146
  %v450 = vunpack.c.l.b16 %v147
  %v451 = vunpack.c.l.b16 %v148
  %v452 = vunpack.c.l.b16 %v149
  %v453 = vunpack.c.l.b16 %v150
  %v454 = vunpack.c.l.b16 %v151
  %v455 = vunpack.c.l.b16 %v152
  %v456 = vunpack.c.l.b16 %v153
  %v457 = vunpack.c.l.b16 %v154
  %v458 = vunpack.c.l.b16 %v155
  %v459 = vunpack.c.l.b16 %v156
  %v460 = vpack.c.b16 %v333, %v332
  %v461 = vpack.c.b16 %v335, %v334
  %v462 = vpack.c.b16 %v337, %v336
  %v463 = vpack.c.b16 %v339, %v338
  %v464 = vpack.c.b16 %v341, %v340
  %v465 = vpack.c.b16 %v343, %v342
  %v466 = vpack.c.b16 %v345, %v344
  %v467 = vpack.c.b16 %v347, %v346
  %v468 = vpack.c.b16 %v349, %v348
  %v469 = vpack.c.b16 %v351, %v350
  %v470 = vpack.c.b16 %v353, %v352
  %v471 = vpack.c.b16 %v355, %v354
  %v472 = vpack.c.b16 %v357, %v356
  %v473 = vpack.c.b16 %v359, %v358
  %v474 = vpack.c.b16 %v361, %v360
  %v475 = vpack.c.b16 %v363, %v362
  %v476 = vpack.c.b16 %v365, %v364
  %v477 = vpack.c.b16 %v367, %v366
  %v478 = vpack.c.b16 %v369, %v368
  %v479 = vpack.c.b16 %v371, %v370
  %v480 = vpack.c.b16 %v373, %v372
  %v481 = vpack.c.b16 %v375, %v374
  %v482 = vpack.c.b16 %v377, %v376
  %v483 = vpack.c.b16 %v379, %v378
  %v484 = vpack.c.b16 %v381, %v380
  %v485 = vpack.c.b16 %v383, %v382
  %v486 = vpack.c.b16 %v385, %v384
  %v487 = vpack.c.b16 %v387, %v386
  %v488 = vpack.c.b16 %v389, %v388
  %v489 = vpack.c.b16 %v391, %v390
  %v490 = vpack.c.b16 %v393, %v392
  %v491 = vpack.c.b16 %v395, %v394
  %v492 = vpack.c.b16 %v397, %v396
  %v493 = vpack.c.b16 %v399, %v398
  %v494 = vpack.c.b16 %v401, %v400
  %v495 = vpack.c.b16 %v403, %v402
  %v496 = vpack.c.b16 %v405, %v404
  %v497 = vpack.c.b16 %v407, %v406
  %v498 = vpack.c.b16 %v409, %v408
  %v499 = vpack.c.b16 %v411, %v410
  %v500 = vpack.c.b16 %v413, %v412
  %v501 = vpack.c.b16 %v415, %v414
  %v502 = vpack.c.b16 %v417, %v416
  %v503 = vpack.c.b16 %v419, %v418
  %v504 = vpack.c.b16 %v421, %v420
  %v505 = vpack.c.b16 %v423, %v422
  %v506 = vpack.c.b16 %v425, %v424
  %v507 = vpack.c.b16 %v427, %v426
  %v508 = vpack.c.b16 %v429, %v428
  %v509 = vpack.c.b16 %v431, %v430
  %v510 = vpack.c.b16 %v433, %v432
  %v511 = vpack.c.b16 %v435, %v434
  %v512 = vpack.c.b16 %v437, %v436
  %v513 = vpack.c.b16 %v439, %v438
  %v514 = vpack.c.b16 %v441, %v440
  %v515 = vpack.c.b16 %v443, %v442
  %v516 = vpack.c.b16 %v445, %v444
  %v517 = vpack.c.b16 %v447, %v446
  %v518 = vpack.c.b16 %v449, %v448
  %v519 = vpack.c.b16 %v451, %v450
  %v520 = vpack.c.b16 %v453, %v452
  %v521 = vpack.c.b16 %v455, %v454
  %v522 = vpack.c.b16 %v457, %v456
  %v523 = vpack.c.b16 %v459, %v458
  %588 = vmatprep.subr.bf16.mxu0 0
  %589 = vmatpush1.bf16.msra.mxu0 %v467
  %590 = vmatprep.subr.bf16.mxu0 0
  %591 = vmatpush1.bf16.msra.mxu0 %v466
  %592 = vmatprep.subr.bf16.mxu0 0
  %593 = vmatpush1.bf16.msra.mxu0 %v465
  %594 = vmatprep.subr.bf16.mxu0 0
  %595 = vmatpush1.bf16.msra.mxu0 %v464
  %596 = vmatprep.subr.bf16.mxu0 0
  %597 = vmatpush1.bf16.msra.mxu0 %v463
  %598 = vmatprep.subr.bf16.mxu0 0
  %599 = vmatpush1.bf16.msra.mxu0 %v462
  %600 = vmatprep.subr.bf16.mxu0 0
  %601 = vmatpush1.bf16.msra.mxu0 %v461
  %602 = vmatprep.subr.bf16.mxu0 0
  %603 = vmatpush1.bf16.msra.mxu0 %v460
  %604 = vmatprep.subr.bf16.mxu0 0
  %605 = vmatpush2.bf16.msra.mxu0 %v475
  %606 = vmatprep.subr.bf16.mxu0 0
  %607 = vmatpush2.bf16.msra.mxu0 %v474
  %608 = vmatprep.subr.bf16.mxu0 0
  %609 = vmatpush2.bf16.msra.mxu0 %v473
  %610 = vmatprep.subr.bf16.mxu0 0
  %611 = vmatpush2.bf16.msra.mxu0 %v472
  %612 = vmatprep.subr.bf16.mxu0 0
  %613 = vmatpush2.bf16.msra.mxu0 %v471
  %614 = vmatprep.subr.bf16.mxu0 0
  %615 = vmatpush2.bf16.msra.mxu0 %v470
  %616 = vmatprep.subr.bf16.mxu0 0
  %617 = vmatpush2.bf16.msra.mxu0 %v469
  %618 = vmatprep.subr.bf16.mxu0 0
  %619 = vmatpush2.bf16.msra.mxu0 %v468
  %620 = vmatprep.mubr.bf16.mxu0 %v189
  %621 = vmatmul.mubr.bf16.gmra.mxu0 %v188
  %v622 = vpop.f32.mrf.mxu0
  %v623 = vadd.f32 %v162, %v622
  %v624 = vpop.f32.mrf.mxu0
  %v625 = vpop.f32.mrf.mxu0
  %v626 = vadd.f32 %v162, %v625
  %v627 = vpop.f32.mrf.mxu0
  %628 = vdwg.mxu0
  %629 = vmatprep.subr.bf16.mxu0 0
  %630 = vmatpush1.bf16.msra.mxu0 %v483
  %631 = vmatprep.subr.bf16.mxu0 0
  %632 = vmatpush1.bf16.msra.mxu0 %v482
  %633 = vmatprep.subr.bf16.mxu0 0
  %634 = vmatpush1.bf16.msra.mxu0 %v481
  %635 = vmatprep.subr.bf16.mxu0 0
  %636 = vmatpush1.bf16.msra.mxu0 %v480
  %637 = vmatprep.subr.bf16.mxu0 0
  %638 = vmatpush1.bf16.msra.mxu0 %v479
  %639 = vmatprep.subr.bf16.mxu0 0
  %640 = vmatpush1.bf16.msra.mxu0 %v478
  %641 = vmatprep.subr.bf16.mxu0 0
  %642 = vmatpush1.bf16.msra.mxu0 %v477
  %643 = vmatprep.subr.bf16.mxu0 0
  %644 = vmatpush1.bf16.msra.mxu0 %v476
  %645 = vmatprep.subr.bf16.mxu0 0
  %646 = vmatpush2.bf16.msra.mxu0 %v491
  %647 = vmatprep.subr.bf16.mxu0 0
  %648 = vmatpush2.bf16.msra.mxu0 %v490
  %649 = vmatprep.subr.bf16.mxu0 0
  %650 = vmatpush2.bf16.msra.mxu0 %v489
  %651 = vmatprep.subr.bf16.mxu0 0
  %652 = vmatpush2.bf16.msra.mxu0 %v488
  %653 = vmatprep.subr.bf16.mxu0 0
  %654 = vmatpush2.bf16.msra.mxu0 %v487
  %655 = vmatprep.subr.bf16.mxu0 0
  %656 = vmatpush2.bf16.msra.mxu0 %v486
  %657 = vmatprep.subr.bf16.mxu0 0
  %658 = vmatpush2.bf16.msra.mxu0 %v485
  %659 = vmatprep.subr.bf16.mxu0 0
  %660 = vmatpush2.bf16.msra.mxu0 %v484
  %661 = vmatprep.mubr.bf16.mxu0 %v191
  %662 = vmatmul.mubr.bf16.gmra.mxu0 %v190
  %v663 = vpop.f32.mrf.mxu0
  %v664 = vadd.f32 %v623, %v663
  %v665 = vpop.f32.mrf.mxu0
  %v666 = vpop.f32.mrf.mxu0
  %v667 = vadd.f32 %v626, %v666
  %v668 = vpop.f32.mrf.mxu0
  %669 = vdwg.mxu0
  %670 = vmatprep.subr.bf16.mxu0 0
  %671 = vmatpush1.bf16.msra.mxu0 %v499
  %672 = vmatprep.subr.bf16.mxu0 0
  %673 = vmatpush1.bf16.msra.mxu0 %v498
  %674 = vmatprep.subr.bf16.mxu0 0
  %675 = vmatpush1.bf16.msra.mxu0 %v497
  %676 = vmatprep.subr.bf16.mxu0 0
  %677 = vmatpush1.bf16.msra.mxu0 %v496
  %678 = vmatprep.subr.bf16.mxu0 0
  %679 = vmatpush1.bf16.msra.mxu0 %v495
  %680 = vmatprep.subr.bf16.mxu0 0
  %681 = vmatpush1.bf16.msra.mxu0 %v494
  %682 = vmatprep.subr.bf16.mxu0 0
  %683 = vmatpush1.bf16.msra.mxu0 %v493
  %684 = vmatprep.subr.bf16.mxu0 0
  %685 = vmatpush1.bf16.msra.mxu0 %v492
  %686 = vmatprep.subr.bf16.mxu0 0
  %687 = vmatpush2.bf16.msra.mxu0 %v507
  %688 = vmatprep.subr.bf16.mxu0 0
  %689 = vmatpush2.bf16.msra.mxu0 %v506
  %690 = vmatprep.subr.bf16.mxu0 0
  %691 = vmatpush2.bf16.msra.mxu0 %v505
  %692 = vmatprep.subr.bf16.mxu0 0
  %693 = vmatpush2.bf16.msra.mxu0 %v504
  %694 = vmatprep.subr.bf16.mxu0 0
  %695 = vmatpush2.bf16.msra.mxu0 %v503
  %696 = vmatprep.subr.bf16.mxu0 0
  %697 = vmatpush2.bf16.msra.mxu0 %v502
  %698 = vmatprep.subr.bf16.mxu0 0
  %699 = vmatpush2.bf16.msra.mxu0 %v501
  %700 = vmatprep.subr.bf16.mxu0 0
  %701 = vmatpush2.bf16.msra.mxu0 %v500
  %702 = vmatprep.mubr.bf16.mxu0 %v193
  %703 = vmatmul.mubr.bf16.gmra.mxu0 %v192
  %v704 = vpop.f32.mrf.mxu0
  %v705 = vadd.f32 %v664, %v704
  %v706 = vpop.f32.mrf.mxu0
  %v707 = vpop.f32.mrf.mxu0
  %v708 = vadd.f32 %v667, %v707
  %v709 = vpop.f32.mrf.mxu0
  %710 = vdwg.mxu0
  %711 = vmatprep.subr.bf16.mxu0 0
  %712 = vmatpush1.bf16.msra.mxu0 %v515
  %713 = vmatprep.subr.bf16.mxu0 0
  %714 = vmatpush1.bf16.msra.mxu0 %v514
  %715 = vmatprep.subr.bf16.mxu0 0
  %716 = vmatpush1.bf16.msra.mxu0 %v513
  %717 = vmatprep.subr.bf16.mxu0 0
  %718 = vmatpush1.bf16.msra.mxu0 %v512
  %719 = vmatprep.subr.bf16.mxu0 0
  %720 = vmatpush1.bf16.msra.mxu0 %v511
  %721 = vmatprep.subr.bf16.mxu0 0
  %722 = vmatpush1.bf16.msra.mxu0 %v510
  %723 = vmatprep.subr.bf16.mxu0 0
  %724 = vmatpush1.bf16.msra.mxu0 %v509
  %725 = vmatprep.subr.bf16.mxu0 0
  %726 = vmatpush1.bf16.msra.mxu0 %v508
  %727 = vmatprep.subr.bf16.mxu0 0
  %728 = vmatpush2.bf16.msra.mxu0 %v523
  %729 = vmatprep.subr.bf16.mxu0 0
  %730 = vmatpush2.bf16.msra.mxu0 %v522
  %731 = vmatprep.subr.bf16.mxu0 0
  %732 = vmatpush2.bf16.msra.mxu0 %v521
  %733 = vmatprep.subr.bf16.mxu0 0
  %734 = vmatpush2.bf16.msra.mxu0 %v520
  %735 = vmatprep.subr.bf16.mxu0 0
  %736 = vmatpush2.bf16.msra.mxu0 %v519
  %737 = vmatprep.subr.bf16.mxu0 0
  %738 = vmatpush2.bf16.msra.mxu0 %v518
  %739 = vmatprep.subr.bf16.mxu0 0
  %740 = vmatpush2.bf16.msra.mxu0 %v517
  %741 = vmatprep.subr.bf16.mxu0 0
  %742 = vmatpush2.bf16.msra.mxu0 %v516
  %743 = vmatprep.mubr.bf16.mxu0 %v195
  %744 = vmatmul.mubr.bf16.gmra.mxu0 %v194
  %v745 = vpop.f32.mrf.mxu0
  %v746 = vadd.f32 %v705, %v745
  %v747 = vpop.f32.mrf.mxu0
  %v748 = vpop.f32.mrf.mxu0
  %v749 = vadd.f32 %v708, %v748
  %v750 = vpop.f32.mrf.mxu0
  %751 = vdwg.mxu0
  %v752 = vld [vmem:[%s3] sm:$0x1]
  %v753 = vld [vmem:[%s4] sm:$0x1]
  %v754 = vadd.f32 %v746, %v749
  %v755 = vrot.slane %v754, 4
  %v756 = vadd.f32 %v754, %v755
  %v757 = vrot.slane %v756, 2
  %v758 = vadd.f32 %v756, %v757
  %v759 = vrot.slane %v758, 1
  %v760 = vadd.f32 %v758, %v759
  %761 = vrot.lane.b32.xlu0 %v760, 16
  %v762 = vpop.permute.xlu0 %761
  %v763 = vadd.f32 %v760, %v762
  %764 = vrot.lane.b32.xlu0 %v760, 32
  %v765 = vpop.permute.xlu0 %764
  %v766 = vadd.f32 %v763, %v765
  %767 = vrot.lane.b32.xlu0 %v760, 48
  %v768 = vpop.permute.xlu0 %767
  %v769 = vadd.f32 %v766, %v768
  %770 = vrot.lane.b32.xlu0 %v760, 64
  %v771 = vpop.permute.xlu0 %770
  %v772 = vadd.f32 %v769, %v771
  %773 = vrot.lane.b32.xlu0 %v760, 80
  %v774 = vpop.permute.xlu0 %773
  %v775 = vadd.f32 %v772, %v774
  %776 = vrot.lane.b32.xlu0 %v760, 96
  %v777 = vpop.permute.xlu0 %776
  %v778 = vadd.f32 %v775, %v777
  %779 = vrot.lane.b32.xlu0 %v760, 112
  %v780 = vpop.permute.xlu0 %779
  %v781 = vadd.f32 %v778, %v780
  %v782 = vmul.f32 %v781, 0.0078125
  %v783 = vlaneseq
  %v784 = vshrl.u32 %v783, 7
  %v785 = vsub.s32 0, %v784
  %v786 = vrot.slane %v782, %v785
  %v787 = vsub.f32 %v746, %v786
  %v788 = vsub.f32 %v749, %v786
  %v789 = vmul.f32 %v787, %v787
  %v790 = vmul.f32 %v788, %v788
  %v791 = vadd.f32 %v789, %v790
  %v792 = vrot.slane %v791, 4
  %v793 = vadd.f32 %v791, %v792
  %v794 = vrot.slane %v793, 2
  %v795 = vadd.f32 %v793, %v794
  %v796 = vrot.slane %v795, 1
  %v797 = vadd.f32 %v795, %v796
  %798 = vrot.lane.b32.xlu0 %v797, 16
  %v799 = vpop.permute.xlu0 %798
  %v800 = vadd.f32 %v797, %v799
  %801 = vrot.lane.b32.xlu0 %v797, 32
  %v802 = vpop.permute.xlu0 %801
  %v803 = vadd.f32 %v800, %v802
  %804 = vrot.lane.b32.xlu0 %v797, 48
  %v805 = vpop.permute.xlu0 %804
  %v806 = vadd.f32 %v803, %v805
  %807 = vrot.lane.b32.xlu0 %v797, 64
  %v808 = vpop.permute.xlu0 %807
  %v809 = vadd.f32 %v806, %v808
  %810 = vrot.lane.b32.xlu0 %v797, 80
  %v811 = vpop.permute.xlu0 %810
  %v812 = vadd.f32 %v809, %v811
  %813 = vrot.lane.b32.xlu0 %v797, 96
  %v814 = vpop.permute.xlu0 %813
  %v815 = vadd.f32 %v812, %v814
  %816 = vrot.lane.b32.xlu0 %v797, 112
  %v817 = vpop.permute.xlu0 %816
  %v818 = vadd.f32 %v815, %v817
  %v819 = vmul.f32 %v818, 0.0078125
  %v820 = vadd.f32 %v819, 1e-05
  %v821 = vrsqrt.pop %v820
  %v822 = vmul.f32 %v752, %v821
  %v824 = vlaneseq
  %v825 = vshrl.u32 %v824, 7
  %v826 = vsub.s32 0, %v825
  %v827 = vrot.slane %v822, %v826
  %v829 = vmul.f32 %v787, %v827
  %v830 = vmul.f32 %v788, %v827
  %v832 = vlaneseq
  %v833 = vshrl.u32 %v832, 7
  %v834 = vsub.s32 0, %v833
  %v835 = vrot.slane %v753, %v834
  %v837 = vadd.f32 %v829, %v835
  %v838 = vadd.f32 %v830, %v835
  %vm839 = vcmp.ge.f32.partialorder %v837, 0.0
  %vm840 = vcmp.ge.f32.partialorder %v838, 0.0
  %v841 = vmul.f32 %v837, 0.2
  %v842 = vmul.f32 %v838, 0.2
  %v843 = vsel %vm839, %v837, %v841
  %v844 = vsel %vm840, %v838, %v842
  %v845 = vpack.c.bf16 %v844, %v843
  %v847 = vunpack.c.l.b16 %v845
  %v848 = vunpack.c.h.b16 %v845
  %v849 = vpack.c.b16 %v847, %v847
  %v850 = vpack.c.b16 %v848, %v848
  %853 = vst [vmem:[%s5] sm:$0xf] %v849
  %854 = vst [vmem:[%s5 + $0x4] sm:$0xf] %v850
  // Predicated region
  $region22: #{discriminator_forward.4} parent=0 // pred_check
    _
  $region23: #{discriminator_forward.4} parent=0 // pred_check_branch
    %856 = sbr.rel (0) target = $region25
  $region24: #{discriminator_forward.4} parent=0 // pred_region
    _
  $region25: #{discriminator_forward.4} parent=0 // pred_fallthru
    _
  // Predicated region
  $region26: #{discriminator_forward.4} parent=0 // pred_check
    _
  $region27: #{discriminator_forward.4} parent=0 // pred_check_branch
    %858 = sbr.rel (0) target = $region29
  $region28: #{discriminator_forward.4} parent=0 // pred_region
    _
  $region29: #{discriminator_forward.4} parent=0 // pred_fallthru
    _

// kernel: tile.62
$region0: #{tile.62}
  #allocation0 [shape = 's32[1]{0}', space=sflag, size = 0x4, scoped, tag = 'scoped memory for tile.62']
  %s0 = inlined_call_operand.vmem [shape: f32[32], index: 0, kind: input, shape index: {}]
  %s1 = inlined_call_operand.vmem [shape: f32[4,32], index: 1, kind: output, shape index: {}]
  // Predicated region
  $region2: #{tile.62} parent=0 // pred_check
    _
  $region3: #{tile.62} parent=0 // pred_check_branch
    %3 = sbr.rel (0) target = $region5
  $region4: #{tile.62} parent=0 // pred_region
    _
  $region5: #{tile.62} parent=0 // pred_fallthru
    _
  %v4 = vld [vmem:[%s0] ss:$0 sm:$0xff]
  %5 = vst [vmem:[%s1] sm:$0xf] %v4

// kernel: tile.63
$region0: #{tile.63}
  %s0 = inlined_call_operand.vmem [shape: f32[4,32], index: 0, kind: input, shape index: {}]
  %s1 = inlined_call_operand.vmem [shape: f32[1,128], index: 1, kind: output, shape index: {}]
  $region1: #{tile.63} parent=0
    #allocation0 [shape = 'u8[4096]{0}', space=vmem, size = 0x1000, scoped, tag = 'scoped mem for output reshape']
    #allocation1 [shape = 'u8[4096]{0}', space=vmem, size = 0x1000, scoped, tag = 'scoped mem for input reshape']
    %s3 = sshll.u32 1, 4
    %s4 = ssub.s32 %s3, 1
    %v5 = vld [vmem:[%s0] sm:%s4]
    %6 = vst [vmem:[#allocation1] sm:%s4] %v5
    %v7 = vld [vmem:[#allocation1] sm:$0x1]
    %vm8 = vcmask 261120
    %9 = vst.msk [vmem:[#allocation0] sm:$0x1] %vm8, %v7
    %s10 = scalar_lea.vmem [#allocation1], 3
    %v11 = vld [vmem:[%s10] sm:$0x1]
    %12 = vrot.lane.b32.xlu0 %v11, 96
    %v13 = vpop.permute.xlu0 %12
    %vm14 = vcmask 1048320
    %15 = vst.msk [vmem:[#allocation0] sm:$0x1] %vm14, %v13
    %s16 = scalar_lea.vmem [#allocation1], 2
    %v17 = vld [vmem:[%s16] sm:$0x1]
    %18 = vrot.lane.b32.xlu0 %v17, 64
    %v19 = vpop.permute.xlu0 %18
    %vm20 = vcmask 785920
    %21 = vst.msk [vmem:[#allocation0] sm:$0x1] %vm20, %v19
    %s22 = scalar_lea.vmem [#allocation1], 1
    %v23 = vld [vmem:[%s22] sm:$0x1]
    %24 = vrot.lane.b32.xlu0 %v23, 32
    %v25 = vpop.permute.xlu0 %24
    %vm26 = vcmask 523520
    %27 = vst.msk [vmem:[#allocation0] sm:$0x1] %vm26, %v25
    %s29 = sshll.u32 1, 1
    %s30 = ssub.s32 %s29, 1
    %v32 = vld [vmem:[#allocation0] sm:%s30]
    %s33 = sshll.u32 1, 1
    %s34 = ssub.s32 %s33, 1
    %35 = vst [vmem:[%s1] sm:%s34] %v32

// kernel: discriminator_forward.5
$region0: #{discriminator_forward.5}
  #allocation0 [shape = 'u32[]', space=smem, size = 0x4, offset = 0x4, fixed_abs, tag = 'smem constant byte address 0x4 - core index']
  #allocation1 [shape = 'u32[144,128]{1,0:T(1,128)}', space=vmem, size = 0x12000, scoped, tag = 'internal scratch']
  %s0 = inlined_call_operand.vmem [shape: bf16[8,1024], index: 0, kind: input, shape index: {}]
  %s1 = inlined_call_operand.vmem [shape: bf16[1024,128], index: 1, kind: input, shape index: {}]
  %s2 = inlined_call_operand.vmem [shape: f32[1,128], index: 2, kind: input, shape index: {}]
  %s3 = inlined_call_operand.vmem [shape: f32[1,128], index: 3, kind: input, shape index: {}]
  %s4 = inlined_call_operand.vmem [shape: f32[1,128], index: 4, kind: input, shape index: {}]
  %s5 = inlined_call_operand.vmem [shape: f32[8,128], index: 5, kind: input, shape index: {}]
  %s6 = inlined_call_operand.vmem [shape: f32[1,128], index: 6, kind: input, shape index: {}]
  %s7 = inlined_call_operand.vmem [shape: f32[2,8], index: 7, kind: input, shape index: {}]
  %s8 = inlined_call_operand.vmem [shape: f32[2,128], index: 8, kind: output, shape index: {}]
  %s9 = sld [smem:[#allocation0]]
  $region42: #{discriminator_forward.5} parent=0
    _
  %s11 = ssub.s32 1, %s9
  %s12 = scalar_select 0, %s11, %s9
  // Predicated region
  $region2: #{discriminator_forward.5} parent=0 // pred_check
    _
  $region3: #{discriminator_forward.5} parent=0 // pred_check_branch
    %14 = sbr.rel (0) target = $region5
  $region4: #{discriminator_forward.5} parent=0 // pred_region
    _
  $region5: #{discriminator_forward.5} parent=0 // pred_fallthru
    _
  // Predicated region
  $region6: #{discriminator_forward.5} parent=0 // pred_check
    _
  $region7: #{discriminator_forward.5} parent=0 // pred_check_branch
    %16 = sbr.rel (0) target = $region9
  $region8: #{discriminator_forward.5} parent=0 // pred_region
    _
  $region9: #{discriminator_forward.5} parent=0 // pred_fallthru
    _
  // Predicated region
  $region10: #{discriminator_forward.5} parent=0 // pred_check
    _
  $region11: #{discriminator_forward.5} parent=0 // pred_check_branch
    %18 = sbr.rel (0) target = $region13
  $region12: #{discriminator_forward.5} parent=0 // pred_region
    _
  $region13: #{discriminator_forward.5} parent=0 // pred_fallthru
    _
  // Predicated region
  $region14: #{discriminator_forward.5} parent=0 // pred_check
    _
  $region15: #{discriminator_forward.5} parent=0 // pred_check_branch
    %20 = sbr.rel (0) target = $region17
  $region16: #{discriminator_forward.5} parent=0 // pred_region
    _
  $region17: #{discriminator_forward.5} parent=0 // pred_fallthru
    _
  // Predicated region
  $region18: #{discriminator_forward.5} parent=0 // pred_check
    _
  $region19: #{discriminator_forward.5} parent=0 // pred_check_branch
    %22 = sbr.rel (0) target = $region21
  $region20: #{discriminator_forward.5} parent=0 // pred_region
    _
  $region21: #{discriminator_forward.5} parent=0 // pred_fallthru
    _
  // Predicated region
  $region22: #{discriminator_forward.5} parent=0 // pred_check
    _
  $region23: #{discriminator_forward.5} parent=0 // pred_check_branch
    %24 = sbr.rel (0) target = $region25
  $region24: #{discriminator_forward.5} parent=0 // pred_region
    _
  $region25: #{discriminator_forward.5} parent=0 // pred_fallthru
    _
  // Predicated region
  $region26: #{discriminator_forward.5} parent=0 // pred_check
    _
  $region27: #{discriminator_forward.5} parent=0 // pred_check_branch
    %26 = sbr.rel (0) target = $region29
  $region28: #{discriminator_forward.5} parent=0 // pred_region
    _
  $region29: #{discriminator_forward.5} parent=0 // pred_fallthru
    _
  // Predicated region
  $region30: #{discriminator_forward.5} parent=0 // pred_check
    _
  $region31: #{discriminator_forward.5} parent=0 // pred_check_branch
    %28 = sbr.rel (0) target = $region33
  $region32: #{discriminator_forward.5} parent=0 // pred_region
    _
  $region33: #{discriminator_forward.5} parent=0 // pred_fallthru
    _
  %v30 = vld [vmem:[%s0] sm:$0xff]
  %v31 = vld [vmem:[%s0 + $0x8] sm:$0xff]
  %v32 = vld [vmem:[%s0 + $0x10] sm:$0xff]
  %v33 = vld [vmem:[%s0 + $0x18] sm:$0xff]
  %v34 = vld [vmem:[%s1] sm:$0xf]
  %v35 = vld [vmem:[%s1 + $0x4] sm:$0xf]
  %v36 = vld [vmem:[%s1 + $0x8] sm:$0xf]
  %v37 = vld [vmem:[%s1 + $0xc] sm:$0xf]
  %v38 = vld [vmem:[%s1 + $0x10] sm:$0xf]
  %v39 = vld [vmem:[%s1 + $0x14] sm:$0xf]
  %v40 = vld [vmem:[%s1 + $0x18] sm:$0xf]
  %v41 = vld [vmem:[%s1 + $0x1c] sm:$0xf]
  %v42 = vld [vmem:[%s1 + $0x20] sm:$0xf]
  %v43 = vld [vmem:[%s1 + $0x24] sm:$0xf]
  %v44 = vld [vmem:[%s1 + $0x28] sm:$0xf]
  %v45 = vld [vmem:[%s1 + $0x2c] sm:$0xf]
  %v46 = vld [vmem:[%s1 + $0x30] sm:$0xf]
  %v47 = vld [vmem:[%s1 + $0x34] sm:$0xf]
  %v48 = vld [vmem:[%s1 + $0x38] sm:$0xf]
  %v49 = vld [vmem:[%s1 + $0x3c] sm:$0xf]
  %v50 = vld [vmem:[%s1 + $0x40] sm:$0xf]
  %v51 = vld [vmem:[%s1 + $0x44] sm:$0xf]
  %v52 = vld [vmem:[%s1 + $0x48] sm:$0xf]
  %v53 = vld [vmem:[%s1 + $0x4c] sm:$0xf]
  %v54 = vld [vmem:[%s1 + $0x50] sm:$0xf]
  %v55 = vld [vmem:[%s1 + $0x54] sm:$0xf]
  %v56 = vld [vmem:[%s1 + $0x58] sm:$0xf]
  %v57 = vld [vmem:[%s1 + $0x5c] sm:$0xf]
  %v58 = vld [vmem:[%s1 + $0x60] sm:$0xf]
  %v59 = vld [vmem:[%s1 + $0x64] sm:$0xf]
  %v60 = vld [vmem:[%s1 + $0x68] sm:$0xf]
  %v61 = vld [vmem:[%s1 + $0x6c] sm:$0xf]
  %v62 = vld [vmem:[%s1 + $0x70] sm:$0xf]
  %v63 = vld [vmem:[%s1 + $0x74] sm:$0xf]
  %v64 = vld [vmem:[%s1 + $0x78] sm:$0xf]
  %v65 = vld [vmem:[%s1 + $0x7c] sm:$0xf]
  %v66 = vld [vmem:[%s1 + $0x80] sm:$0xf]
  %v67 = vld [vmem:[%s1 + $0x84] sm:$0xf]
  %v68 = vld [vmem:[%s1 + $0x88] sm:$0xf]
  %v69 = vld [vmem:[%s1 + $0x8c] sm:$0xf]
  %v70 = vld [vmem:[%s1 + $0x90] sm:$0xf]
  %v71 = vld [vmem:[%s1 + $0x94] sm:$0xf]
  %v72 = vld [vmem:[%s1 + $0x98] sm:$0xf]
  %v73 = vld [vmem:[%s1 + $0x9c] sm:$0xf]
  %v74 = vld [vmem:[%s1 + $0xa0] sm:$0xf]
  %v75 = vld [vmem:[%s1 + $0xa4] sm:$0xf]
  %v76 = vld [vmem:[%s1 + $0xa8] sm:$0xf]
  %v77 = vld [vmem:[%s1 + $0xac] sm:$0xf]
  %v78 = vld [vmem:[%s1 + $0xb0] sm:$0xf]
  %v79 = vld [vmem:[%s1 + $0xb4] sm:$0xf]
  %v80 = vld [vmem:[%s1 + $0xb8] sm:$0xf]
  %v81 = vld [vmem:[%s1 + $0xbc] sm:$0xf]
  %v82 = vld [vmem:[%s1 + $0xc0] sm:$0xf]
  %v83 = vld [vmem:[%s1 + $0xc4] sm:$0xf]
  %v84 = vld [vmem:[%s1 + $0xc8] sm:$0xf]
  %v85 = vld [vmem:[%s1 + $0xcc] sm:$0xf]
  %v86 = vld [vmem:[%s1 + $0xd0] sm:$0xf]
  %v87 = vld [vmem:[%s1 + $0xd4] sm:$0xf]
  %v88 = vld [vmem:[%s1 + $0xd8] sm:$0xf]
  %v89 = vld [vmem:[%s1 + $0xdc] sm:$0xf]
  %v90 = vld [vmem:[%s1 + $0xe0] sm:$0xf]
  %v91 = vld [vmem:[%s1 + $0xe4] sm:$0xf]
  %v92 = vld [vmem:[%s1 + $0xe8] sm:$0xf]
  %v93 = vld [vmem:[%s1 + $0xec] sm:$0xf]
  %v94 = vld [vmem:[%s1 + $0xf0] sm:$0xf]
  %v95 = vld [vmem:[%s1 + $0xf4] sm:$0xf]
  %v96 = vld [vmem:[%s1 + $0xf8] sm:$0xf]
  %v97 = vld [vmem:[%s1 + $0xfc] sm:$0xf]
  %v98 = vld [vmem:[%s1 + $0x100] sm:$0xf]
  %v99 = vld [vmem:[%s1 + $0x104] sm:$0xf]
  %v100 = vld [vmem:[%s1 + $0x108] sm:$0xf]
  %v101 = vld [vmem:[%s1 + $0x10c] sm:$0xf]
  %v102 = vld [vmem:[%s1 + $0x110] sm:$0xf]
  %v103 = vld [vmem:[%s1 + $0x114] sm:$0xf]
  %v104 = vld [vmem:[%s1 + $0x118] sm:$0xf]
  %v105 = vld [vmem:[%s1 + $0x11c] sm:$0xf]
  %v106 = vld [vmem:[%s1 + $0x120] sm:$0xf]
  %v107 = vld [vmem:[%s1 + $0x124] sm:$0xf]
  %v108 = vld [vmem:[%s1 + $0x128] sm:$0xf]
  %v109 = vld [vmem:[%s1 + $0x12c] sm:$0xf]
  %v110 = vld [vmem:[%s1 + $0x130] sm:$0xf]
  %v111 = vld [vmem:[%s1 + $0x134] sm:$0xf]
  %v112 = vld [vmem:[%s1 + $0x138] sm:$0xf]
  %v113 = vld [vmem:[%s1 + $0x13c] sm:$0xf]
  %v114 = vld [vmem:[%s1 + $0x140] sm:$0xf]
  %v115 = vld [vmem:[%s1 + $0x144] sm:$0xf]
  %v116 = vld [vmem:[%s1 + $0x148] sm:$0xf]
  %v117 = vld [vmem:[%s1 + $0x14c] sm:$0xf]
  %v118 = vld [vmem:[%s1 + $0x150] sm:$0xf]
  %v119 = vld [vmem:[%s1 + $0x154] sm:$0xf]
  %v120 = vld [vmem:[%s1 + $0x158] sm:$0xf]
  %v121 = vld [vmem:[%s1 + $0x15c] sm:$0xf]
  %v122 = vld [vmem:[%s1 + $0x160] sm:$0xf]
  %v123 = vld [vmem:[%s1 + $0x164] sm:$0xf]
  %v124 = vld [vmem:[%s1 + $0x168] sm:$0xf]
  %v125 = vld [vmem:[%s1 + $0x16c] sm:$0xf]
  %v126 = vld [vmem:[%s1 + $0x170] sm:$0xf]
  %v127 = vld [vmem:[%s1 + $0x174] sm:$0xf]
  %v128 = vld [vmem:[%s1 + $0x178] sm:$0xf]
  %v129 = vld [vmem:[%s1 + $0x17c] sm:$0xf]
  %v130 = vld [vmem:[%s1 + $0x180] sm:$0xf]
  %v131 = vld [vmem:[%s1 + $0x184] sm:$0xf]
  %v132 = vld [vmem:[%s1 + $0x188] sm:$0xf]
  %v133 = vld [vmem:[%s1 + $0x18c] sm:$0xf]
  %v134 = vld [vmem:[%s1 + $0x190] sm:$0xf]
  %v135 = vld [vmem:[%s1 + $0x194] sm:$0xf]
  %v136 = vld [vmem:[%s1 + $0x198] sm:$0xf]
  %v137 = vld [vmem:[%s1 + $0x19c] sm:$0xf]
  %v138 = vld [vmem:[%s1 + $0x1a0] sm:$0xf]
  %v139 = vld [vmem:[%s1 + $0x1a4] sm:$0xf]
  %v140 = vld [vmem:[%s1 + $0x1a8] sm:$0xf]
  %v141 = vld [vmem:[%s1 + $0x1ac] sm:$0xf]
  %v142 = vld [vmem:[%s1 + $0x1b0] sm:$0xf]
  %v143 = vld [vmem:[%s1 + $0x1b4] sm:$0xf]
  %v144 = vld [vmem:[%s1 + $0x1b8] sm:$0xf]
  %v145 = vld [vmem:[%s1 + $0x1bc] sm:$0xf]
  %v146 = vld [vmem:[%s1 + $0x1c0] sm:$0xf]
  %v147 = vld [vmem:[%s1 + $0x1c4] sm:$0xf]
  %v148 = vld [vmem:[%s1 + $0x1c8] sm:$0xf]
  %v149 = vld [vmem:[%s1 + $0x1cc] sm:$0xf]
  %v150 = vld [vmem:[%s1 + $0x1d0] sm:$0xf]
  %v151 = vld [vmem:[%s1 + $0x1d4] sm:$0xf]
  %v152 = vld [vmem:[%s1 + $0x1d8] sm:$0xf]
  %v153 = vld [vmem:[%s1 + $0x1dc] sm:$0xf]
  %v154 = vld [vmem:[%s1 + $0x1e0] sm:$0xf]
  %v155 = vld [vmem:[%s1 + $0x1e4] sm:$0xf]
  %v156 = vld [vmem:[%s1 + $0x1e8] sm:$0xf]
  %v157 = vld [vmem:[%s1 + $0x1ec] sm:$0xf]
  %v158 = vld [vmem:[%s1 + $0x1f0] sm:$0xf]
  %v159 = vld [vmem:[%s1 + $0x1f4] sm:$0xf]
  %v160 = vld [vmem:[%s1 + $0x1f8] sm:$0xf]
  %v161 = vld [vmem:[%s1 + $0x1fc] sm:$0xf]
  %v162 = vld [vmem:[%s2] sm:$0x1]
  %v164 = vlaneseq
  %v165 = vshrl.u32 %v164, 7
  %v166 = vsub.s32 0, %v165
  %v167 = vrot.slane %v162, %v166
  %v173 = vunpack.c.l.b16 %v30
  %v174 = vunpack.c.h.b16 %v30
  %v175 = vunpack.c.l.b16 %v31
  %v176 = vunpack.c.h.b16 %v31
  %v177 = vunpack.c.l.b16 %v32
  %v178 = vunpack.c.h.b16 %v32
  %v179 = vunpack.c.l.b16 %v33
  %v180 = vunpack.c.h.b16 %v33
  %v181 = vpack.c.b16 %v173, %v173
  %v182 = vpack.c.b16 %v174, %v174
  %v183 = vpack.c.b16 %v175, %v175
  %v184 = vpack.c.b16 %v176, %v176
  %v185 = vpack.c.b16 %v177, %v177
  %v186 = vpack.c.b16 %v178, %v178
  %v187 = vpack.c.b16 %v179, %v179
  %v188 = vpack.c.b16 %v180, %v180
  %v325 = vunpack.c.l.b16 %v34
  %v326 = vunpack.c.l.b16 %v35
  %v327 = vunpack.c.l.b16 %v36
  %v328 = vunpack.c.l.b16 %v37
  %v329 = vunpack.c.l.b16 %v38
  %v330 = vunpack.c.l.b16 %v39
  %v331 = vunpack.c.l.b16 %v40
  %v332 = vunpack.c.l.b16 %v41
  %v333 = vunpack.c.l.b16 %v42
  %v334 = vunpack.c.l.b16 %v43
  %v335 = vunpack.c.l.b16 %v44
  %v336 = vunpack.c.l.b16 %v45
  %v337 = vunpack.c.l.b16 %v46
  %v338 = vunpack.c.l.b16 %v47
  %v339 = vunpack.c.l.b16 %v48
  %v340 = vunpack.c.l.b16 %v49
  %v341 = vunpack.c.l.b16 %v50
  %v342 = vunpack.c.l.b16 %v51
  %v343 = vunpack.c.l.b16 %v52
  %v344 = vunpack.c.l.b16 %v53
  %v345 = vunpack.c.l.b16 %v54
  %v346 = vunpack.c.l.b16 %v55
  %v347 = vunpack.c.l.b16 %v56
  %v348 = vunpack.c.l.b16 %v57
  %v349 = vunpack.c.l.b16 %v58
  %v350 = vunpack.c.l.b16 %v59
  %v351 = vunpack.c.l.b16 %v60
  %v352 = vunpack.c.l.b16 %v61
  %v353 = vunpack.c.l.b16 %v62
  %v354 = vunpack.c.l.b16 %v63
  %v355 = vunpack.c.l.b16 %v64
  %v356 = vunpack.c.l.b16 %v65
  %v357 = vunpack.c.l.b16 %v66
  %v358 = vunpack.c.l.b16 %v67
  %v359 = vunpack.c.l.b16 %v68
  %v360 = vunpack.c.l.b16 %v69
  %v361 = vunpack.c.l.b16 %v70
  %v362 = vunpack.c.l.b16 %v71
  %v363 = vunpack.c.l.b16 %v72
  %v364 = vunpack.c.l.b16 %v73
  %v365 = vunpack.c.l.b16 %v74
  %v366 = vunpack.c.l.b16 %v75
  %v367 = vunpack.c.l.b16 %v76
  %v368 = vunpack.c.l.b16 %v77
  %v369 = vunpack.c.l.b16 %v78
  %v370 = vunpack.c.l.b16 %v79
  %v371 = vunpack.c.l.b16 %v80
  %v372 = vunpack.c.l.b16 %v81
  %v373 = vunpack.c.l.b16 %v82
  %v374 = vunpack.c.l.b16 %v83
  %v375 = vunpack.c.l.b16 %v84
  %v376 = vunpack.c.l.b16 %v85
  %v377 = vunpack.c.l.b16 %v86
  %v378 = vunpack.c.l.b16 %v87
  %v379 = vunpack.c.l.b16 %v88
  %v380 = vunpack.c.l.b16 %v89
  %v381 = vunpack.c.l.b16 %v90
  %v382 = vunpack.c.l.b16 %v91
  %v383 = vunpack.c.l.b16 %v92
  %v384 = vunpack.c.l.b16 %v93
  %v385 = vunpack.c.l.b16 %v94
  %v386 = vunpack.c.l.b16 %v95
  %v387 = vunpack.c.l.b16 %v96
  %v388 = vunpack.c.l.b16 %v97
  %v389 = vunpack.c.l.b16 %v98
  %v390 = vunpack.c.l.b16 %v99
  %v391 = vunpack.c.l.b16 %v100
  %v392 = vunpack.c.l.b16 %v101
  %v393 = vunpack.c.l.b16 %v102
  %v394 = vunpack.c.l.b16 %v103
  %v395 = vunpack.c.l.b16 %v104
  %v396 = vunpack.c.l.b16 %v105
  %v397 = vunpack.c.l.b16 %v106
  %v398 = vunpack.c.l.b16 %v107
  %v399 = vunpack.c.l.b16 %v108
  %v400 = vunpack.c.l.b16 %v109
  %v401 = vunpack.c.l.b16 %v110
  %v402 = vunpack.c.l.b16 %v111
  %v403 = vunpack.c.l.b16 %v112
  %v404 = vunpack.c.l.b16 %v113
  %v405 = vunpack.c.l.b16 %v114
  %v406 = vunpack.c.l.b16 %v115
  %v407 = vunpack.c.l.b16 %v116
  %v408 = vunpack.c.l.b16 %v117
  %v409 = vunpack.c.l.b16 %v118
  %v410 = vunpack.c.l.b16 %v119
  %v411 = vunpack.c.l.b16 %v120
  %v412 = vunpack.c.l.b16 %v121
  %v413 = vunpack.c.l.b16 %v122
  %v414 = vunpack.c.l.b16 %v123
  %v415 = vunpack.c.l.b16 %v124
  %v416 = vunpack.c.l.b16 %v125
  %v417 = vunpack.c.l.b16 %v126
  %v418 = vunpack.c.l.b16 %v127
  %v419 = vunpack.c.l.b16 %v128
  %v420 = vunpack.c.l.b16 %v129
  %v421 = vunpack.c.l.b16 %v130
  %v422 = vunpack.c.l.b16 %v131
  %v423 = vunpack.c.l.b16 %v132
  %v424 = vunpack.c.l.b16 %v133
  %v425 = vunpack.c.l.b16 %v134
  %v426 = vunpack.c.l.b16 %v135
  %v427 = vunpack.c.l.b16 %v136
  %v428 = vunpack.c.l.b16 %v137
  %v429 = vunpack.c.l.b16 %v138
  %v430 = vunpack.c.l.b16 %v139
  %v431 = vunpack.c.l.b16 %v140
  %v432 = vunpack.c.l.b16 %v141
  %v433 = vunpack.c.l.b16 %v142
  %v434 = vunpack.c.l.b16 %v143
  %v435 = vunpack.c.l.b16 %v144
  %v436 = vunpack.c.l.b16 %v145
  %v437 = vunpack.c.l.b16 %v146
  %v438 = vunpack.c.l.b16 %v147
  %v439 = vunpack.c.l.b16 %v148
  %v440 = vunpack.c.l.b16 %v149
  %v441 = vunpack.c.l.b16 %v150
  %v442 = vunpack.c.l.b16 %v151
  %v443 = vunpack.c.l.b16 %v152
  %v444 = vunpack.c.l.b16 %v153
  %v445 = vunpack.c.l.b16 %v154
  %v446 = vunpack.c.l.b16 %v155
  %v447 = vunpack.c.l.b16 %v156
  %v448 = vunpack.c.l.b16 %v157
  %v449 = vunpack.c.l.b16 %v158
  %v450 = vunpack.c.l.b16 %v159
  %v451 = vunpack.c.l.b16 %v160
  %v452 = vunpack.c.l.b16 %v161
  %v453 = vpack.c.b16 %v326, %v325
  %v454 = vpack.c.b16 %v328, %v327
  %v455 = vpack.c.b16 %v330, %v329
  %v456 = vpack.c.b16 %v332, %v331
  %v457 = vpack.c.b16 %v334, %v333
  %v458 = vpack.c.b16 %v336, %v335
  %v459 = vpack.c.b16 %v338, %v337
  %v460 = vpack.c.b16 %v340, %v339
  %v461 = vpack.c.b16 %v342, %v341
  %v462 = vpack.c.b16 %v344, %v343
  %v463 = vpack.c.b16 %v346, %v345
  %v464 = vpack.c.b16 %v348, %v347
  %v465 = vpack.c.b16 %v350, %v349
  %v466 = vpack.c.b16 %v352, %v351
  %v467 = vpack.c.b16 %v354, %v353
  %v468 = vpack.c.b16 %v356, %v355
  %v469 = vpack.c.b16 %v358, %v357
  %v470 = vpack.c.b16 %v360, %v359
  %v471 = vpack.c.b16 %v362, %v361
  %v472 = vpack.c.b16 %v364, %v363
  %v473 = vpack.c.b16 %v366, %v365
  %v474 = vpack.c.b16 %v368, %v367
  %v475 = vpack.c.b16 %v370, %v369
  %v476 = vpack.c.b16 %v372, %v371
  %v477 = vpack.c.b16 %v374, %v373
  %v478 = vpack.c.b16 %v376, %v375
  %v479 = vpack.c.b16 %v378, %v377
  %v480 = vpack.c.b16 %v380, %v379
  %v481 = vpack.c.b16 %v382, %v381
  %v482 = vpack.c.b16 %v384, %v383
  %v483 = vpack.c.b16 %v386, %v385
  %v484 = vpack.c.b16 %v388, %v387
  %v485 = vpack.c.b16 %v390, %v389
  %v486 = vpack.c.b16 %v392, %v391
  %v487 = vpack.c.b16 %v394, %v393
  %v488 = vpack.c.b16 %v396, %v395
  %v489 = vpack.c.b16 %v398, %v397
  %v490 = vpack.c.b16 %v400, %v399
  %v491 = vpack.c.b16 %v402, %v401
  %v492 = vpack.c.b16 %v404, %v403
  %v493 = vpack.c.b16 %v406, %v405
  %v494 = vpack.c.b16 %v408, %v407
  %v495 = vpack.c.b16 %v410, %v409
  %v496 = vpack.c.b16 %v412, %v411
  %v497 = vpack.c.b16 %v414, %v413
  %v498 = vpack.c.b16 %v416, %v415
  %v499 = vpack.c.b16 %v418, %v417
  %v500 = vpack.c.b16 %v420, %v419
  %v501 = vpack.c.b16 %v422, %v421
  %v502 = vpack.c.b16 %v424, %v423
  %v503 = vpack.c.b16 %v426, %v425
  %v504 = vpack.c.b16 %v428, %v427
  %v505 = vpack.c.b16 %v430, %v429
  %v506 = vpack.c.b16 %v432, %v431
  %v507 = vpack.c.b16 %v434, %v433
  %v508 = vpack.c.b16 %v436, %v435
  %v509 = vpack.c.b16 %v438, %v437
  %v510 = vpack.c.b16 %v440, %v439
  %v511 = vpack.c.b16 %v442, %v441
  %v512 = vpack.c.b16 %v444, %v443
  %v513 = vpack.c.b16 %v446, %v445
  %v514 = vpack.c.b16 %v448, %v447
  %v515 = vpack.c.b16 %v450, %v449
  %v516 = vpack.c.b16 %v452, %v451
  %581 = vmatprep.subr.bf16.mxu0 0
  %582 = vmatpush1.bf16.msra.mxu0 %v460
  %583 = vmatprep.subr.bf16.mxu0 0
  %584 = vmatpush1.bf16.msra.mxu0 %v459
  %585 = vmatprep.subr.bf16.mxu0 0
  %586 = vmatpush1.bf16.msra.mxu0 %v458
  %587 = vmatprep.subr.bf16.mxu0 0
  %588 = vmatpush1.bf16.msra.mxu0 %v457
  %589 = vmatprep.subr.bf16.mxu0 0
  %590 = vmatpush1.bf16.msra.mxu0 %v456
  %591 = vmatprep.subr.bf16.mxu0 0
  %592 = vmatpush1.bf16.msra.mxu0 %v455
  %593 = vmatprep.subr.bf16.mxu0 0
  %594 = vmatpush1.bf16.msra.mxu0 %v454
  %595 = vmatprep.subr.bf16.mxu0 0
  %596 = vmatpush1.bf16.msra.mxu0 %v453
  %597 = vmatprep.subr.bf16.mxu0 0
  %598 = vmatpush2.bf16.msra.mxu0 %v468
  %599 = vmatprep.subr.bf16.mxu0 0
  %600 = vmatpush2.bf16.msra.mxu0 %v467
  %601 = vmatprep.subr.bf16.mxu0 0
  %602 = vmatpush2.bf16.msra.mxu0 %v466
  %603 = vmatprep.subr.bf16.mxu0 0
  %604 = vmatpush2.bf16.msra.mxu0 %v465
  %605 = vmatprep.subr.bf16.mxu0 0
  %606 = vmatpush2.bf16.msra.mxu0 %v464
  %607 = vmatprep.subr.bf16.mxu0 0
  %608 = vmatpush2.bf16.msra.mxu0 %v463
  %609 = vmatprep.subr.bf16.mxu0 0
  %610 = vmatpush2.bf16.msra.mxu0 %v462
  %611 = vmatprep.subr.bf16.mxu0 0
  %612 = vmatpush2.bf16.msra.mxu0 %v461
  %613 = vmatprep.mubr.bf16.mxu0 %v182
  %614 = vmatmul.mubr.bf16.gmra.mxu0 %v181
  %v615 = vpop.f32.mrf.mxu0
  %v616 = vadd.f32 %v167, %v615
  %v617 = vpop.f32.mrf.mxu0
  %v618 = vpop.f32.mrf.mxu0
  %v619 = vpop.f32.mrf.mxu0
  %620 = vdwg.mxu0
  %621 = vmatprep.subr.bf16.mxu0 0
  %622 = vmatpush1.bf16.msra.mxu0 %v476
  %623 = vmatprep.subr.bf16.mxu0 0
  %624 = vmatpush1.bf16.msra.mxu0 %v475
  %625 = vmatprep.subr.bf16.mxu0 0
  %626 = vmatpush1.bf16.msra.mxu0 %v474
  %627 = vmatprep.subr.bf16.mxu0 0
  %628 = vmatpush1.bf16.msra.mxu0 %v473
  %629 = vmatprep.subr.bf16.mxu0 0
  %630 = vmatpush1.bf16.msra.mxu0 %v472
  %631 = vmatprep.subr.bf16.mxu0 0
  %632 = vmatpush1.bf16.msra.mxu0 %v471
  %633 = vmatprep.subr.bf16.mxu0 0
  %634 = vmatpush1.bf16.msra.mxu0 %v470
  %635 = vmatprep.subr.bf16.mxu0 0
  %636 = vmatpush1.bf16.msra.mxu0 %v469
  %637 = vmatprep.subr.bf16.mxu0 0
  %638 = vmatpush2.bf16.msra.mxu0 %v484
  %639 = vmatprep.subr.bf16.mxu0 0
  %640 = vmatpush2.bf16.msra.mxu0 %v483
  %641 = vmatprep.subr.bf16.mxu0 0
  %642 = vmatpush2.bf16.msra.mxu0 %v482
  %643 = vmatprep.subr.bf16.mxu0 0
  %644 = vmatpush2.bf16.msra.mxu0 %v481
  %645 = vmatprep.subr.bf16.mxu0 0
  %646 = vmatpush2.bf16.msra.mxu0 %v480
  %647 = vmatprep.subr.bf16.mxu0 0
  %648 = vmatpush2.bf16.msra.mxu0 %v479
  %649 = vmatprep.subr.bf16.mxu0 0
  %650 = vmatpush2.bf16.msra.mxu0 %v478
  %651 = vmatprep.subr.bf16.mxu0 0
  %652 = vmatpush2.bf16.msra.mxu0 %v477
  %653 = vmatprep.mubr.bf16.mxu0 %v184
  %654 = vmatmul.mubr.bf16.gmra.mxu0 %v183
  %v655 = vpop.f32.mrf.mxu0
  %v656 = vadd.f32 %v616, %v655
  %v657 = vpop.f32.mrf.mxu0
  %v658 = vpop.f32.mrf.mxu0
  %v659 = vpop.f32.mrf.mxu0
  %660 = vdwg.mxu0
  %661 = vmatprep.subr.bf16.mxu0 0
  %662 = vmatpush1.bf16.msra.mxu0 %v492
  %663 = vmatprep.subr.bf16.mxu0 0
  %664 = vmatpush1.bf16.msra.mxu0 %v491
  %665 = vmatprep.subr.bf16.mxu0 0
  %666 = vmatpush1.bf16.msra.mxu0 %v490
  %667 = vmatprep.subr.bf16.mxu0 0
  %668 = vmatpush1.bf16.msra.mxu0 %v489
  %669 = vmatprep.subr.bf16.mxu0 0
  %670 = vmatpush1.bf16.msra.mxu0 %v488
  %671 = vmatprep.subr.bf16.mxu0 0
  %672 = vmatpush1.bf16.msra.mxu0 %v487
  %673 = vmatprep.subr.bf16.mxu0 0
  %674 = vmatpush1.bf16.msra.mxu0 %v486
  %675 = vmatprep.subr.bf16.mxu0 0
  %676 = vmatpush1.bf16.msra.mxu0 %v485
  %677 = vmatprep.subr.bf16.mxu0 0
  %678 = vmatpush2.bf16.msra.mxu0 %v500
  %679 = vmatprep.subr.bf16.mxu0 0
  %680 = vmatpush2.bf16.msra.mxu0 %v499
  %681 = vmatprep.subr.bf16.mxu0 0
  %682 = vmatpush2.bf16.msra.mxu0 %v498
  %683 = vmatprep.subr.bf16.mxu0 0
  %684 = vmatpush2.bf16.msra.mxu0 %v497
  %685 = vmatprep.subr.bf16.mxu0 0
  %686 = vmatpush2.bf16.msra.mxu0 %v496
  %687 = vmatprep.subr.bf16.mxu0 0
  %688 = vmatpush2.bf16.msra.mxu0 %v495
  %689 = vmatprep.subr.bf16.mxu0 0
  %690 = vmatpush2.bf16.msra.mxu0 %v494
  %691 = vmatprep.subr.bf16.mxu0 0
  %692 = vmatpush2.bf16.msra.mxu0 %v493
  %693 = vmatprep.mubr.bf16.mxu0 %v186
  %694 = vmatmul.mubr.bf16.gmra.mxu0 %v185
  %v695 = vpop.f32.mrf.mxu0
  %v696 = vadd.f32 %v656, %v695
  %v697 = vpop.f32.mrf.mxu0
  %v698 = vpop.f32.mrf.mxu0
  %v699 = vpop.f32.mrf.mxu0
  %700 = vdwg.mxu0
  %701 = vmatprep.subr.bf16.mxu0 0
  %702 = vmatpush1.bf16.msra.mxu0 %v508
  %703 = vmatprep.subr.bf16.mxu0 0
  %704 = vmatpush1.bf16.msra.mxu0 %v507
  %705 = vmatprep.subr.bf16.mxu0 0
  %706 = vmatpush1.bf16.msra.mxu0 %v506
  %707 = vmatprep.subr.bf16.mxu0 0
  %708 = vmatpush1.bf16.msra.mxu0 %v505
  %709 = vmatprep.subr.bf16.mxu0 0
  %710 = vmatpush1.bf16.msra.mxu0 %v504
  %711 = vmatprep.subr.bf16.mxu0 0
  %712 = vmatpush1.bf16.msra.mxu0 %v503
  %713 = vmatprep.subr.bf16.mxu0 0
  %714 = vmatpush1.bf16.msra.mxu0 %v502
  %715 = vmatprep.subr.bf16.mxu0 0
  %716 = vmatpush1.bf16.msra.mxu0 %v501
  %717 = vmatprep.subr.bf16.mxu0 0
  %718 = vmatpush2.bf16.msra.mxu0 %v516
  %719 = vmatprep.subr.bf16.mxu0 0
  %720 = vmatpush2.bf16.msra.mxu0 %v515
  %721 = vmatprep.subr.bf16.mxu0 0
  %722 = vmatpush2.bf16.msra.mxu0 %v514
  %723 = vmatprep.subr.bf16.mxu0 0
  %724 = vmatpush2.bf16.msra.mxu0 %v513
  %725 = vmatprep.subr.bf16.mxu0 0
  %726 = vmatpush2.bf16.msra.mxu0 %v512
  %727 = vmatprep.subr.bf16.mxu0 0
  %728 = vmatpush2.bf16.msra.mxu0 %v511
  %729 = vmatprep.subr.bf16.mxu0 0
  %730 = vmatpush2.bf16.msra.mxu0 %v510
  %731 = vmatprep.subr.bf16.mxu0 0
  %732 = vmatpush2.bf16.msra.mxu0 %v509
  %733 = vmatprep.mubr.bf16.mxu0 %v188
  %734 = vmatmul.mubr.bf16.gmra.mxu0 %v187
  %v735 = vpop.f32.mrf.mxu0
  %v736 = vadd.f32 %v696, %v735
  %v737 = vpop.f32.mrf.mxu0
  %v738 = vpop.f32.mrf.mxu0
  %v739 = vpop.f32.mrf.mxu0
  %740 = vdwg.mxu0
  %v741 = vld [vmem:[%s3] sm:$0x1]
  %v742 = vld [vmem:[%s4] sm:$0x1]
  %v743 = vrot.slane %v736, 4
  %v744 = vadd.f32 %v736, %v743
  %v745 = vrot.slane %v744, 2
  %v746 = vadd.f32 %v744, %v745
  %v747 = vrot.slane %v746, 1
  %v748 = vadd.f32 %v746, %v747
  %749 = vrot.lane.b32.xlu0 %v748, 32
  %v750 = vpop.permute.xlu0 %749
  %v751 = vadd.f32 %v748, %v750
  %752 = vrot.lane.b32.xlu0 %v748, 64
  %v753 = vpop.permute.xlu0 %752
  %v754 = vadd.f32 %v751, %v753
  %755 = vrot.lane.b32.xlu0 %v748, 96
  %v756 = vpop.permute.xlu0 %755
  %v757 = vadd.f32 %v754, %v756
  %v758 = vmul.f32 %v757, 0.03125
  %v759 = vlaneseq
  %v760 = vshrl.u32 %v759, 7
  %v761 = vsub.s32 0, %v760
  %v762 = vrot.slane %v758, %v761
  %v763 = vsub.f32 %v736, %v762
  %v764 = vmul.f32 %v763, %v763
  %v765 = vrot.slane %v764, 4
  %v766 = vadd.f32 %v764, %v765
  %v767 = vrot.slane %v766, 2
  %v768 = vadd.f32 %v766, %v767
  %v769 = vrot.slane %v768, 1
  %v770 = vadd.f32 %v768, %v769
  %771 = vrot.lane.b32.xlu0 %v770, 32
  %v772 = vpop.permute.xlu0 %771
  %v773 = vadd.f32 %v770, %v772
  %774 = vrot.lane.b32.xlu0 %v770, 64
  %v775 = vpop.permute.xlu0 %774
  %v776 = vadd.f32 %v773, %v775
  %777 = vrot.lane.b32.xlu0 %v770, 96
  %v778 = vpop.permute.xlu0 %777
  %v779 = vadd.f32 %v776, %v778
  %v780 = vmul.f32 %v779, 0.03125
  %v781 = vadd.f32 %v780, 1e-05
  %v782 = vrsqrt.pop %v781
  %v783 = vmul.f32 %v741, %v782
  %v785 = vlaneseq
  %v786 = vshrl.u32 %v785, 7
  %v787 = vsub.s32 0, %v786
  %v788 = vrot.slane %v783, %v787
  %v790 = vmul.f32 %v763, %v788
  %v792 = vlaneseq
  %v793 = vshrl.u32 %v792, 7
  %v794 = vsub.s32 0, %v793
  %v795 = vrot.slane %v742, %v794
  %v797 = vadd.f32 %v790, %v795
  %vm798 = vcmp.ge.f32.partialorder %v797, 0.0
  %v799 = vmul.f32 %v797, 0.2
  %v800 = vsel %vm798, %v797, %v799
  %v801 = vld [vmem:[%s5] sm:$0xff]
  %v802 = vmul.f32 %v800, %v801
  %v803 = vld [vmem:[%s7] sm:$0x3]
  %vm804 = vcmask 64512
  %v806 = vsel %vm804, %v803, 0
  %808 = vmatprep.subr.mxu0 0.0
  %809 = vmatpush1.msra.mxu0 0.0
  %810 = vmatprep.subr.mxu0 0.0
  %811 = vmatpush1.msra.mxu0 0.0
  %812 = vmatprep.subr.mxu0 0.0
  %813 = vmatpush1.msra.mxu0 0.0
  %814 = vmatprep.subr.mxu0 0.0
  %815 = vmatpush1.msra.mxu0 0.0
  %816 = vmatprep.subr.mxu0 0.0
  %817 = vmatpush1.msra.mxu0 0.0
  %818 = vmatprep.subr.mxu0 0.0
  %819 = vmatpush1.msra.mxu0 0.0
  %820 = vmatprep.subr.mxu0 0.0
  %821 = vmatpush1.msra.mxu0 0.0
  %822 = vmatprep.subr.mxu0 0.0
  %823 = vmatpush1.msra.mxu0 0.0
  %824 = vmatprep.subr.mxu0 0.0
  %825 = vmatpush1.msra.mxu0 0.0
  %826 = vmatprep.subr.mxu0 0.0
  %827 = vmatpush1.msra.mxu0 0.0
  %828 = vmatprep.subr.mxu0 0.0
  %829 = vmatpush1.msra.mxu0 0.0
  %830 = vmatprep.subr.mxu0 0.0
  %831 = vmatpush1.msra.mxu0 0.0
  %832 = vmatprep.subr.mxu0 0.0
  %833 = vmatpush1.msra.mxu0 0.0
  %834 = vmatprep.subr.mxu0 0.0
  %835 = vmatpush1.msra.mxu0 0.0
  %836 = vmatprep.subr.mxu0 0.0
  %837 = vmatpush1.msra.mxu0 0.0
  %838 = vmatprep.subr.mxu0 0.0
  %839 = vmatpush1.msra.mxu0 %v802
  %840 = vmatprep.subr.mxu0 0.0
  %841 = vmatpush2.msra.mxu0 0.0
  %842 = vmatprep.subr.mxu0 0.0
  %843 = vmatpush2.msra.mxu0 0.0
  %844 = vmatprep.subr.mxu0 0.0
  %845 = vmatpush2.msra.mxu0 0.0
  %846 = vmatprep.subr.mxu0 0.0
  %847 = vmatpush2.msra.mxu0 0.0
  %848 = vmatprep.subr.mxu0 0.0
  %849 = vmatpush2.msra.mxu0 0.0
  %850 = vmatprep.subr.mxu0 0.0
  %851 = vmatpush2.msra.mxu0 0.0
  %852 = vmatprep.subr.mxu0 0.0
  %853 = vmatpush2.msra.mxu0 0.0
  %854 = vmatprep.subr.mxu0 0.0
  %855 = vmatpush2.msra.mxu0 0.0
  %856 = vmatprep.subr.mxu0 0.0
  %857 = vmatpush2.msra.mxu0 0.0
  %858 = vmatprep.subr.mxu0 0.0
  %859 = vmatpush2.msra.mxu0 0.0
  %860 = vmatprep.subr.mxu0 0.0
  %861 = vmatpush2.msra.mxu0 0.0
  %862 = vmatprep.subr.mxu0 0.0
  %863 = vmatpush2.msra.mxu0 0.0
  %864 = vmatprep.subr.mxu0 0.0
  %865 = vmatpush2.msra.mxu0 0.0
  %866 = vmatprep.subr.mxu0 0.0
  %867 = vmatpush2.msra.mxu0 0.0
  %868 = vmatprep.subr.mxu0 0.0
  %869 = vmatpush2.msra.mxu0 0.0
  %870 = vmatprep.subr.mxu0 0.0
  %871 = vmatpush2.msra.mxu0 0.0
  %872 = vmatprep.mubr.f32.mxu0 0.0
  %873 = vmatmul.mubr.f32.gmra.mxu0 %v806
  %v874 = vpop.f32.mrf.mxu0
  %v875 = vadd.f32 0.0, %v874
  %v876 = vpop.f32.mrf.mxu0
  %877 = vdwg.mxu0
  %vm878 = vcmask 1041408
  %v879 = vsel %vm878, %v875, 0.0
  %880 = vadd.xlane.f32.xlu0 %v879
  %v881 = vpop.xlane.xlu0 %880
  %v882 = vld [vmem:[%s6] sm:$0x1]
  %v884 = vlaneseq
  %v885 = vshrl.u32 %v884, 7
  %v886 = vsub.s32 0, %v885
  %v887 = vrot.slane %v882, %v886
  %v889 = vadd.f32 %v881, %v887
  %v890 = vsub.f32 0.0, %v889
  %v891 = vmul.f32 %v890, 1.442695
  %v892 = vpow.pop %v891
  %v893 = vadd.f32 %v892, 1.0
  %v894 = vrcp.pop %v893
  %895 = vst [vmem:[%s8] sm:$0x3] %v894
  // Predicated region
  $region34: #{discriminator_forward.5} parent=0 // pred_check
    _
  $region35: #{discriminator_forward.5} parent=0 // pred_check_branch
    %897 = sbr.rel (0) target = $region37
  $region36: #{discriminator_forward.5} parent=0 // pred_region
    _
  $region37: #{discriminator_forward.5} parent=0 // pred_fallthru
    _
  // Predicated region
  $region38: #{discriminator_forward.5} parent=0 // pred_check
    _
  $region39: #{discriminator_forward.5} parent=0 // pred_check_branch
    %899 = sbr.rel (0) target = $region41
  $region40: #{discriminator_forward.5} parent=0 // pred_region
    _
  $region41: #{discriminator_forward.5} parent=0 // pred_fallthru
    _

</llo_original>
